<compile_context>
chip_gen: v7x
topology: tpu7x:2x2x1
jax: 0.10.0
libtpu: 0.0.40
codegen_flags: <defaults>
</compile_context>

<pallas_src>
import numpy as np

import jax
import jax.numpy as jnp
from jax.experimental import pallas as pl
from jax.experimental.pallas import tpu as pltpu


C1 = 10   # conv1 out channels
C2 = 30   # conv2 out channels
KH = KW = 3


def _round_up(n, m):
    return ((n + m - 1) // m) * m


# ---------------------------------------------------------------------------
# Kernel: two fused lane-dense GEMMs + branch-max (= max-pool) + bias + ReLU.
# ---------------------------------------------------------------------------
def conv_net_kernel(x_ref, a_ref, b1_ref, bm_ref, b2_ref, o_ref):
    mid = a_ref.shape[1] // 4    # padded pool1 feature width (512)
    outw = bm_ref.shape[1] // 4  # padded output feature width (128)

    x = x_ref[...]  # (B, H*W) f32, lane dim already a multiple of 128

    # ---- layer 1: conv1 for all 4 pool-window positions in ONE matmul ----
    t = jnp.dot(x, a_ref[...], preferred_element_type=jnp.float32)  # (B, 4*mid)
    m = jnp.maximum(jnp.maximum(t[:, 0 * mid:1 * mid], t[:, 1 * mid:2 * mid]),
                    jnp.maximum(t[:, 2 * mid:3 * mid], t[:, 3 * mid:4 * mid]))
    # max_pool(relu(conv + b)) == relu(max_k(conv_k) + b)  (shared bias, monotone)
    h = jnp.maximum(m + b1_ref[...], 0.0)                            # (B, mid)

    # ---- layer 2: conv2 for all 4 pool-window positions in ONE matmul ----
    u = jnp.dot(h, bm_ref[...], preferred_element_type=jnp.float32)  # (B, 4*outw)
    m2 = jnp.maximum(jnp.maximum(u[:, 0 * outw:1 * outw], u[:, 1 * outw:2 * outw]),
                     jnp.maximum(u[:, 2 * outw:3 * outw], u[:, 3 * outw:4 * outw]))
    o_ref[...] = jnp.maximum(m2 + b2_ref[...], 0.0)                  # (B, outw)


# ---------------------------------------------------------------------------
# Host-side lowering of the conv net to the two fused GEMM operands.
# ---------------------------------------------------------------------------
def lower_conv_net(w1, b1, w2, b2, H, W):
    """Lower conv1->relu->pool->conv2->relu->pool->flatten to GEMM form.

    w1: (C1, 1, 3, 3), b1: (C1,), w2: (C2, C1, 3, 3), b2: (C2,)  (PyTorch layout)
    Returns (A, bias1, Bm, bias2, dims) with A: (in_pad, 4*mid_pad),
    Bm: (mid_pad, 4*out_pad); branch k/j = 2*dh + dw over the 2x2 pool window.
    """
    w1 = np.asarray(w1, np.float32)
    b1 = np.asarray(b1, np.float32)
    w2 = np.asarray(w2, np.float32)
    b2 = np.asarray(b2, np.float32)

    Hc1, Wc1 = H - KH + 1, W - KW + 1          # conv1 output spatial (14, 14)
    P1, Q1 = Hc1 // 2, Wc1 // 2                # pool1 output spatial (7, 7)
    Hc2, Wc2 = P1 - KH + 1, Q1 - KW + 1        # conv2 output spatial (5, 5)
    P2, Q2 = Hc2 // 2, Wc2 // 2                # pool2 output spatial (2, 2)

    in_dim = H * W                              # 256
    mid_dim = P1 * Q1 * C1                      # 490
    out_dim = C2 * P2 * Q2                      # 120
    in_pad = _round_up(in_dim, 128)             # 256
    mid_pad = _round_up(mid_dim, 128)           # 512
    out_pad = _round_up(out_dim, 128)           # 128

    # ----- stage 1 matrix: x_flat (B, in_pad) @ A -> 4 branches of pool1 -----
    A = np.zeros((in_pad, 4, mid_pad), np.float32)
    p = np.arange(P1)[:, None, None]
    q = np.arange(Q1)[None, :, None]
    c = np.arange(C1)[None, None, :]
    col1 = p * (Q1 * C1) + q * C1 + c                       # (P1, Q1, C1) column ids
    for dh in range(2):
        for dw in range(2):
            k = 2 * dh + dw
            for kh in range(KH):
                for kw in range(KW):
                    i = 2 * p + dh + kh
                    j = 2 * q + dw + kw
                    rows = np.broadcast_to(i * W + j, col1.shape)
                    vals = np.broadcast_to(w1[c, 0, kh, kw], col1.shape)
                    A[rows.ravel(), k, col1.ravel()] = vals.ravel()
    A = A.reshape(in_pad, 4 * mid_pad)

    bias1 = np.zeros((1, mid_pad), np.float32)
    bias1[0, col1.ravel()] = np.broadcast_to(b1[c], col1.shape).ravel()

    # ----- stage 2 matrix: pooled1 (B, mid_pad) @ Bm -> 4 branches of pool2 ---
    Bm = np.zeros((mid_pad, 4, out_pad), np.float32)
    r = np.arange(P2)[:, None, None]
    s = np.arange(Q2)[None, :, None]
    d = np.arange(C2)[None, None, :]
    col2 = d * (P2 * Q2) + r * Q2 + s                       # PyTorch (C,H,W) flatten order
    for dh in range(2):
        for dw in range(2):
            jb = 2 * dh + dw
            for kh in range(KH):
                for kw in range(KW):
                    for cc in range(C1):
                        u = 2 * r + dh + kh
                        v = 2 * s + dw + kw
                        rows = np.broadcast_to(u * (Q1 * C1) + v * C1 + cc, col2.shape)
                        vals = np.broadcast_to(w2[d, cc, kh, kw], col2.shape)
                        Bm[rows.ravel(), jb, col2.ravel()] = vals.ravel()
    Bm = Bm.reshape(mid_pad, 4 * out_pad)

    bias2 = np.zeros((1, out_pad), np.float32)
    bias2[0, col2.ravel()] = np.broadcast_to(b2[d], col2.shape).ravel()

    dims = dict(in_dim=in_dim, in_pad=in_pad, mid_pad=mid_pad,
                out_pad=out_pad, out_dim=out_dim)
    return (jnp.asarray(A), jnp.asarray(bias1), jnp.asarray(Bm),
            jnp.asarray(bias2), dims)


# ---------------------------------------------------------------------------
# Wrapper: pallas_call with full-array blocks, grid=(1,), lane-dense output.
# ---------------------------------------------------------------------------
def convolution_forward(x, lowered):
    A, bias1, Bm, bias2, dims = lowered
    B = x.shape[0]

    x_flat = x.reshape(B, -1).astype(jnp.float32)           # (B, H*W), C=1 input
    if dims["in_pad"] != dims["in_dim"]:
        x_flat = jnp.pad(x_flat, ((0, 0), (0, dims["in_pad"] - dims["in_dim"])))

    inputs = (x_flat, A, bias1, Bm, bias2)

    def full_spec(arr):
        shape = arr.shape
        return pl.BlockSpec(shape, lambda i, _s=shape: (0,) * len(_s))

    out = pl.pallas_call(
        conv_net_kernel,
        out_shape=jax.ShapeDtypeStruct((B, dims["out_pad"]), jnp.float32),
        grid=(1,),
        in_specs=[full_spec(a) for a in inputs],
        out_specs=pl.BlockSpec((B, dims["out_pad"]), lambda i: (0, 0)),
        compiler_params=pltpu.CompilerParams(
            dimension_semantics=("arbitrary",)),
    )(*inputs)

    # 120 real features, already in PyTorch NCHW flatten order.
    return out[:, :dims["out_dim"]]


def init_params(key):
    """nn.Conv2d default init: U(-1/sqrt(fan_in), 1/sqrt(fan_in)) for w and b."""
    k1, k2, k3, k4 = jax.random.split(key, 4)
    fan1 = 1 * KH * KW
    fan2 = C1 * KH * KW
    b1lim = 1.0 / np.sqrt(fan1)
    b2lim = 1.0 / np.sqrt(fan2)
    w1 = jax.random.uniform(k1, (C1, 1, KH, KW), jnp.float32, -b1lim, b1lim)
    b1 = jax.random.uniform(k2, (C1,), jnp.float32, -b1lim, b1lim)
    w2 = jax.random.uniform(k3, (C2, C1, KH, KW), jnp.float32, -b2lim, b2lim)
    b2 = jax.random.uniform(k4, (C2,), jnp.float32, -b2lim, b2lim)
    return w1, b1, w2, b2


# ---------------------------------------------------------------------------
# Pure-JAX reference of the PyTorch forward (for runtime validation).
# ---------------------------------------------------------------------------
def reference_forward(x, w1, b1, w2, b2):
    xt = jnp.transpose(x, (0, 3, 1, 2))  # NHWC -> NCHW (the module's permute)
    y = jax.lax.conv_general_dilated(
        xt, w1, (1, 1), "VALID", dimension_numbers=("NCHW", "OIHW", "NCHW"))
    y = jnp.maximum(y + b1[None, :, None, None], 0.0)
    y = jax.lax.reduce_window(y, -jnp.inf, jax.lax.max,
                              (1, 1, 2, 2), (1, 1, 2, 2), "VALID")
    y = jax.lax.conv_general_dilated(
        y, w2, (1, 1), "VALID", dimension_numbers=("NCHW", "OIHW", "NCHW"))
    y = jnp.maximum(y + b2[None, :, None, None], 0.0)
    y = jax.lax.reduce_window(y, -jnp.inf, jax.lax.max,
                              (1, 1, 2, 2), (1, 1, 2, 2), "VALID")
    return y.reshape(y.shape[0], -1)


if __name__ == "__main__":
    key = jax.random.PRNGKey(0)
    k_param, k_x = jax.random.split(key)

    w1, b1, w2, b2 = init_params(k_param)

    B, H, W = 2, 16, 16
    x = jax.random.normal(k_x, (B, H, W, 1), jnp.float32)   # module expects NHWC, C=1

    lowered = lower_conv_net(w1, b1, w2, b2, H, W)
    out = convolution_forward(x, lowered)
    jax.block_until_ready(out)

    assert out.shape == (B, 120), out.shape

    ref = reference_forward(x, w1, b1, w2, b2)
    ref = np.asarray(jax.block_until_ready(ref))
    got = np.asarray(out)
    # Norm-relative check: robust to TPU matmul/conv pass-precision differences,
    # but catches any structural / layout error (those are O(1)).
    rel = np.linalg.norm(got - ref) / max(np.linalg.norm(ref), 1e-6)
    assert rel < 1e-2, f"relative error too large: {rel}"

    print("KERNEL_OK")
</pallas_src>

<mosaic_0001>
module attributes {stable_mosaic.version = 11 : i64} {
  func.func @conv_net_kernel(%arg0: i32, %arg1: memref<2x256xf32, #tpu.memory_space<vmem>>, %arg2: memref<256x2048xf32, #tpu.memory_space<vmem>>, %arg3: memref<1x512xf32, #tpu.memory_space<vmem>>, %arg4: memref<512x512xf32, #tpu.memory_space<vmem>>, %arg5: memref<1x128xf32, #tpu.memory_space<vmem>>, %arg6: memref<2x128xf32, #tpu.memory_space<vmem>>) attributes {dimension_semantics = [#tpu.dimension_semantics<arbitrary>], iteration_bounds = array<i64: 1>, scalar_prefetch = 0 : i64, scratch_operands = 0 : i64, tpu.core_type = #tpu.core_type<tc>, window_params = [{pipeline_mode = #tpu.pipeline_mode<synchronous>, transform_indices = @transform_0, window_bounds = array<i64: 2, 256>}, {pipeline_mode = #tpu.pipeline_mode<synchronous>, transform_indices = @transform_1, window_bounds = array<i64: 256, 2048>}, {pipeline_mode = #tpu.pipeline_mode<synchronous>, transform_indices = @transform_2, window_bounds = array<i64: 1, 512>}, {pipeline_mode = #tpu.pipeline_mode<synchronous>, transform_indices = @transform_3, window_bounds = array<i64: 512, 512>}, {pipeline_mode = #tpu.pipeline_mode<synchronous>, transform_indices = @transform_4, window_bounds = array<i64: 1, 128>}, {pipeline_mode = #tpu.pipeline_mode<synchronous>, transform_indices = @transform_5, window_bounds = array<i64: 2, 128>}]} {
    %c0 = arith.constant 0 : index
    %c0_0 = arith.constant 0 : index
    %0 = vector.load %arg1[%c0, %c0_0] : memref<2x256xf32, #tpu.memory_space<vmem>>, vector<2x256xf32>
    %c0_1 = arith.constant 0 : index
    %c0_2 = arith.constant 0 : index
    %1 = vector.load %arg2[%c0_1, %c0_2] : memref<256x2048xf32, #tpu.memory_space<vmem>>, vector<256x2048xf32>
    %cst = arith.constant dense<0.000000e+00> : vector<2x2048xf32>
    %2 = tpu.matmul %0, %1, %cst {dimension_numbers = #tpu.dot_dimension_numbers<[1], [0], [0], [1], [0, 0, 1, 1], [], []>} : vector<2x256xf32>, vector<256x2048xf32>, vector<2x2048xf32> -> vector<2x2048xf32>
    %3 = vector.extract_strided_slice %2 {offsets = [0, 0], sizes = [2, 512], strides = [1, 1]} : vector<2x2048xf32> to vector<2x512xf32>
    %4 = vector.extract_strided_slice %2 {offsets = [0, 512], sizes = [2, 512], strides = [1, 1]} : vector<2x2048xf32> to vector<2x512xf32>
    %5 = arith.maximumf %3, %4 : vector<2x512xf32>
    %6 = vector.extract_strided_slice %2 {offsets = [0, 1024], sizes = [2, 512], strides = [1, 1]} : vector<2x2048xf32> to vector<2x512xf32>
    %7 = vector.extract_strided_slice %2 {offsets = [0, 1536], sizes = [2, 512], strides = [1, 1]} : vector<2x2048xf32> to vector<2x512xf32>
    %8 = arith.maximumf %6, %7 : vector<2x512xf32>
    %9 = arith.maximumf %5, %8 : vector<2x512xf32>
    %c0_3 = arith.constant 0 : index
    %c0_4 = arith.constant 0 : index
    %10 = vector.load %arg3[%c0_3, %c0_4] : memref<1x512xf32, #tpu.memory_space<vmem>>, vector<1x512xf32>
    %11 = vector.broadcast %10 : vector<1x512xf32> to vector<2x512xf32>
    %12 = arith.addf %9, %11 : vector<2x512xf32>
    %cst_5 = arith.constant 0.000000e+00 : f32
    %13 = vector.broadcast %cst_5 : f32 to vector<2x512xf32>
    %14 = arith.maximumf %12, %13 : vector<2x512xf32>
    %c0_6 = arith.constant 0 : index
    %c0_7 = arith.constant 0 : index
    %15 = vector.load %arg4[%c0_6, %c0_7] : memref<512x512xf32, #tpu.memory_space<vmem>>, vector<512x512xf32>
    %cst_8 = arith.constant dense<0.000000e+00> : vector<2x512xf32>
    %16 = tpu.matmul %14, %15, %cst_8 {dimension_numbers = #tpu.dot_dimension_numbers<[1], [0], [0], [1], [0, 0, 1, 1], [], []>} : vector<2x512xf32>, vector<512x512xf32>, vector<2x512xf32> -> vector<2x512xf32>
    %17 = vector.extract_strided_slice %16 {offsets = [0, 0], sizes = [2, 128], strides = [1, 1]} : vector<2x512xf32> to vector<2x128xf32>
    %18 = vector.extract_strided_slice %16 {offsets = [0, 128], sizes = [2, 128], strides = [1, 1]} : vector<2x512xf32> to vector<2x128xf32>
    %19 = arith.maximumf %17, %18 : vector<2x128xf32>
    %20 = vector.extract_strided_slice %16 {offsets = [0, 256], sizes = [2, 128], strides = [1, 1]} : vector<2x512xf32> to vector<2x128xf32>
    %21 = vector.extract_strided_slice %16 {offsets = [0, 384], sizes = [2, 128], strides = [1, 1]} : vector<2x512xf32> to vector<2x128xf32>
    %22 = arith.maximumf %20, %21 : vector<2x128xf32>
    %23 = arith.maximumf %19, %22 : vector<2x128xf32>
    %c0_9 = arith.constant 0 : index
    %c0_10 = arith.constant 0 : index
    %24 = vector.load %arg5[%c0_9, %c0_10] : memref<1x128xf32, #tpu.memory_space<vmem>>, vector<1x128xf32>
    %25 = vector.broadcast %24 : vector<1x128xf32> to vector<2x128xf32>
    %26 = arith.addf %23, %25 : vector<2x128xf32>
    %cst_11 = arith.constant 0.000000e+00 : f32
    %27 = vector.broadcast %cst_11 : f32 to vector<2x128xf32>
    %28 = arith.maximumf %26, %27 : vector<2x128xf32>
    %c0_12 = arith.constant 0 : index
    %c0_13 = arith.constant 0 : index
    %29 = vector.load %arg6[%c0_12, %c0_13] : memref<2x128xf32, #tpu.memory_space<vmem>>, vector<2x128xf32>
    tpu.vector_store %arg6[%c0_12, %c0_13], %28 {strides = array<i32>} : memref<2x128xf32, #tpu.memory_space<vmem>>, vector<2x128xf32>,
    return
  }
  func.func @transform_0(%arg0: i32) -> (i32, i32) {
    %c0_i32 = arith.constant 0 : i32
    %c0_i32_0 = arith.constant 0 : i32
    %c0_i32_1 = arith.constant 0 : i32
    return %c0_i32, %c0_i32_0 : i32, i32
  }
  func.func @transform_1(%arg0: i32) -> (i32, i32) {
    %c0_i32 = arith.constant 0 : i32
    %c0_i32_0 = arith.constant 0 : i32
    %c0_i32_1 = arith.constant 0 : i32
    return %c0_i32, %c0_i32_0 : i32, i32
  }
  func.func @transform_2(%arg0: i32) -> (i32, i32) {
    %c0_i32 = arith.constant 0 : i32
    %c0_i32_0 = arith.constant 0 : i32
    %c0_i32_1 = arith.constant 0 : i32
    return %c0_i32, %c0_i32_0 : i32, i32
  }
  func.func @transform_3(%arg0: i32) -> (i32, i32) {
    %c0_i32 = arith.constant 0 : i32
    %c0_i32_0 = arith.constant 0 : i32
    %c0_i32_1 = arith.constant 0 : i32
    return %c0_i32, %c0_i32_0 : i32, i32
  }
  func.func @transform_4(%arg0: i32) -> (i32, i32) {
    %c0_i32 = arith.constant 0 : i32
    %c0_i32_0 = arith.constant 0 : i32
    %c0_i32_1 = arith.constant 0 : i32
    return %c0_i32, %c0_i32_0 : i32, i32
  }
  func.func @transform_5(%arg0: i32) -> (i32, i32) {
    %c0_i32 = arith.constant 0 : i32
    %c0_i32_0 = arith.constant 0 : i32
    %c0_i32_1 = arith.constant 0 : i32
    return %c0_i32, %c0_i32_0 : i32, i32
  }
}

</mosaic_0001>

<llo_original>
// kernel: tpu_custom_call.1
$region0: #{tpu_custom_call.1}
  #allocation0 [shape = 'u32[]', space=smem, size = 0x4, offset = 0x4, fixed_abs, tag = 'smem constant byte address 0x4 - core index']
  #allocation1 [shape = 'u32[144,128]{1,0:T(1,128)}', space=vmem, size = 0x12000, scoped, tag = 'internal scratch']
  %s0 = inlined_call_operand.hbm [shape: f32[2,256], index: 0, kind: input, shape index: {}]
  %s1 = inlined_call_operand.hbm [shape: f32[256,2048], index: 1, kind: input, shape index: {}]
  %s2 = inlined_call_operand.hbm [shape: f32[1,512], index: 2, kind: input, shape index: {}]
  %s3 = inlined_call_operand.hbm [shape: f32[512,512], index: 3, kind: input, shape index: {}]
  %s4 = inlined_call_operand.hbm [shape: f32[1,128], index: 4, kind: input, shape index: {}]
  %s5 = inlined_call_operand.hbm [shape: f32[2,128], index: 5, kind: output, shape index: {}]
  %s6 = sld [smem:[#allocation0]]
  $region50: #{tpu_custom_call.1} parent=0
    _
  %s8 = ssub.s32 1, %s6
  %s9 = scalar_select 0, %s8, %s6
  $region1: #{tpu_custom_call.1} parent=0
    #allocation2 [shape = 'u8[2048]{0}', space=vmem, size = 0x800, scoped, tag = 'input window, operand 0, single buffered']
    #allocation3 [shape = 's32[1]{0}', space=sflag, size = 0x4, scoped, tag = 'scoped memory for tpu_custom_call.1']
    #allocation4 [shape = 's32[1]{0}', space=sflag, size = 0x4, scoped, tag = 'scoped memory for tpu_custom_call.1']
    #allocation5 [shape = 'u8[2097152]{0}', space=vmem, size = 0x200000, scoped, tag = 'input window, operand 1, single buffered']
    #allocation6 [shape = 's32[1]{0}', space=sflag, size = 0x4, scoped, tag = 'scoped memory for tpu_custom_call.1']
    #allocation7 [shape = 'u8[2048]{0}', space=vmem, size = 0x800, scoped, tag = 'input window, operand 2, single buffered']
    #allocation8 [shape = 'u8[1048576]{0}', space=vmem, size = 0x100000, scoped, tag = 'input window, operand 3, single buffered']
    #allocation9 [shape = 's32[1]{0}', space=sflag, size = 0x4, scoped, tag = 'scoped memory for tpu_custom_call.1']
    #allocation10 [shape = 'u8[512]{0}', space=vmem, size = 0x400, scoped, tag = 'input window, operand 4, single buffered']
    #allocation11 [shape = 'u8[1024]{0}', space=vmem, size = 0x400, scoped, tag = 'output window, operand 0, single buffered']
    %10 = vsyncpa [#allocation3], 0
    %11 = vsyncpa [#allocation6], 0
    %12 = vsyncpa [#allocation9], 0
    %13 = vsyncpa [#allocation4], 0
    // Predicated region
    $region2: #{tpu_custom_call.1} parent=1 // pred_check
      _
    $region3: #{tpu_custom_call.1} parent=1 // pred_check_branch
      %15 = sbr.rel (0) target = $region5
    $region4: #{tpu_custom_call.1} parent=1 // pred_region
      %s17 = ssub.s32 64, 64
      %18 = vsyncadd [#allocation3], %s17
      %s20 = sshll.u32 [#allocation2], 4
      %s21 = int_to_ptr.vmem [resolvable:$true] %s20
      %23 = dma.hbm_to_vmem [thread:$0]  %s0, 64, %s21, [#allocation3]
    $region5: #{tpu_custom_call.1} parent=1 // pred_fallthru
      _
    // Predicated region
    $region6: #{tpu_custom_call.1} parent=1 // pred_check
      _
    $region7: #{tpu_custom_call.1} parent=1 // pred_check_branch
      %25 = sbr.rel (0) target = $region9
    $region8: #{tpu_custom_call.1} parent=1 // pred_region
      %s27 = ssub.s32 65536, 65536
      %28 = vsyncadd [#allocation6], %s27
      %s29 = sshll.u32 [#allocation5], 4
      %s30 = int_to_ptr.vmem [resolvable:$true] %s29
      %35 = dma.hbm_to_vmem [thread:$0]  %s1, 65536, %s30, [#allocation6], 2048, 2048, 128
    $region9: #{tpu_custom_call.1} parent=1 // pred_fallthru
      _
    // Predicated region
    $region10: #{tpu_custom_call.1} parent=1 // pred_check
      _
    $region11: #{tpu_custom_call.1} parent=1 // pred_check_branch
      %37 = sbr.rel (0) target = $region13
    $region12: #{tpu_custom_call.1} parent=1 // pred_region
      %s39 = ssub.s32 64, 64
      %40 = vsyncadd [#allocation6], %s39
      %s42 = sshll.u32 [#allocation7], 4
      %s43 = int_to_ptr.vmem [resolvable:$true] %s42
      %45 = dma.hbm_to_vmem [thread:$0]  %s2, 64, %s43, [#allocation6]
    $region13: #{tpu_custom_call.1} parent=1 // pred_fallthru
      _
    // Predicated region
    $region14: #{tpu_custom_call.1} parent=1 // pred_check
      _
    $region15: #{tpu_custom_call.1} parent=1 // pred_check_branch
      %47 = sbr.rel (0) target = $region17
    $region16: #{tpu_custom_call.1} parent=1 // pred_region
      %s49 = ssub.s32 32768, 32768
      %50 = vsyncadd [#allocation9], %s49
      %s51 = sshll.u32 [#allocation8], 4
      %s52 = int_to_ptr.vmem [resolvable:$true] %s51
      %57 = dma.hbm_to_vmem [thread:$0]  %s3, 32768, %s52, [#allocation9], 512, 512, 32
    $region17: #{tpu_custom_call.1} parent=1 // pred_fallthru
      _
    // Predicated region
    $region18: #{tpu_custom_call.1} parent=1 // pred_check
      _
    $region19: #{tpu_custom_call.1} parent=1 // pred_check_branch
      %59 = sbr.rel (0) target = $region21
    $region20: #{tpu_custom_call.1} parent=1 // pred_region
      %s61 = ssub.s32 16, 16
      %62 = vsyncadd [#allocation9], %s61
      %s64 = sshll.u32 [#allocation10], 4
      %s65 = int_to_ptr.vmem [resolvable:$true] %s64
      %67 = dma.hbm_to_vmem [thread:$0]  %s4, 16, %s65, [#allocation9]
    $region21: #{tpu_custom_call.1} parent=1 // pred_fallthru
      _
    // Predicated region
    $region22: #{tpu_custom_call.1} parent=1 // pred_check
      _
    $region23: #{tpu_custom_call.1} parent=1 // pred_check_branch
      %69 = sbr.rel (0) target = $region25
    $region24: #{tpu_custom_call.1} parent=1 // pred_region
      %70 = dma.done [#allocation3], 64
    $region25: #{tpu_custom_call.1} parent=1 // pred_fallthru
      _
    // Predicated region
    $region26: #{tpu_custom_call.1} parent=1 // pred_check
      _
    $region27: #{tpu_custom_call.1} parent=1 // pred_check_branch
      %72 = sbr.rel (0) target = $region29
    $region28: #{tpu_custom_call.1} parent=1 // pred_region
      %73 = dma.done [#allocation6], 65536
    $region29: #{tpu_custom_call.1} parent=1 // pred_fallthru
      _
    // Predicated region
    $region30: #{tpu_custom_call.1} parent=1 // pred_check
      _
    $region31: #{tpu_custom_call.1} parent=1 // pred_check_branch
      %75 = sbr.rel (0) target = $region33
    $region32: #{tpu_custom_call.1} parent=1 // pred_region
      %76 = dma.done [#allocation6], 64
    $region33: #{tpu_custom_call.1} parent=1 // pred_fallthru
      _
    // Predicated region
    $region34: #{tpu_custom_call.1} parent=1 // pred_check
      _
    $region35: #{tpu_custom_call.1} parent=1 // pred_check_branch
      %78 = sbr.rel (0) target = $region37
    $region36: #{tpu_custom_call.1} parent=1 // pred_region
      %79 = dma.done [#allocation9], 32768
    $region37: #{tpu_custom_call.1} parent=1 // pred_fallthru
      _
    // Predicated region
    $region38: #{tpu_custom_call.1} parent=1 // pred_check
      _
    $region39: #{tpu_custom_call.1} parent=1 // pred_check_branch
      %81 = sbr.rel (0) target = $region41
    $region40: #{tpu_custom_call.1} parent=1 // pred_region
      %82 = dma.done [#allocation9], 16
    $region41: #{tpu_custom_call.1} parent=1 // pred_fallthru
      _
    %v83 = vld [vmem:[#allocation2] sm:$0xf]
    %v84 = vld [vmem:[#allocation5] sm:$0xff]
    %v85 = vld [vmem:[#allocation5 + $0x8] sm:$0xff]
    %v86 = vld [vmem:[#allocation5 + $0x10] sm:$0xff]
    %v87 = vld [vmem:[#allocation5 + $0x18] sm:$0xff]
    %v88 = vld [vmem:[#allocation5 + $0x20] sm:$0xff]
    %v89 = vld [vmem:[#allocation5 + $0x28] sm:$0xff]
    %v90 = vld [vmem:[#allocation5 + $0x30] sm:$0xff]
    %v91 = vld [vmem:[#allocation5 + $0x38] sm:$0xff]
    %v92 = vld [vmem:[#allocation5 + $0x40] sm:$0xff]
    %v93 = vld [vmem:[#allocation5 + $0x48] sm:$0xff]
    %v94 = vld [vmem:[#allocation5 + $0x50] sm:$0xff]
    %v95 = vld [vmem:[#allocation5 + $0x58] sm:$0xff]
    %v96 = vld [vmem:[#allocation5 + $0x60] sm:$0xff]
    %v97 = vld [vmem:[#allocation5 + $0x68] sm:$0xff]
    %v98 = vld [vmem:[#allocation5 + $0x70] sm:$0xff]
    %v99 = vld [vmem:[#allocation5 + $0x78] sm:$0xff]
    %v100 = vld [vmem:[#allocation5 + $0x80] sm:$0xff]
    %v101 = vld [vmem:[#allocation5 + $0x88] sm:$0xff]
    %v102 = vld [vmem:[#allocation5 + $0x90] sm:$0xff]
    %v103 = vld [vmem:[#allocation5 + $0x98] sm:$0xff]
    %v104 = vld [vmem:[#allocation5 + $0xa0] sm:$0xff]
    %v105 = vld [vmem:[#allocation5 + $0xa8] sm:$0xff]
    %v106 = vld [vmem:[#allocation5 + $0xb0] sm:$0xff]
    %v107 = vld [vmem:[#allocation5 + $0xb8] sm:$0xff]
    %v108 = vld [vmem:[#allocation5 + $0xc0] sm:$0xff]
    %v109 = vld [vmem:[#allocation5 + $0xc8] sm:$0xff]
    %v110 = vld [vmem:[#allocation5 + $0xd0] sm:$0xff]
    %v111 = vld [vmem:[#allocation5 + $0xd8] sm:$0xff]
    %v112 = vld [vmem:[#allocation5 + $0xe0] sm:$0xff]
    %v113 = vld [vmem:[#allocation5 + $0xe8] sm:$0xff]
    %v114 = vld [vmem:[#allocation5 + $0xf0] sm:$0xff]
    %v115 = vld [vmem:[#allocation5 + $0xf8] sm:$0xff]
    %v116 = vld [vmem:[#allocation5 + $0x100] sm:$0xff]
    %v117 = vld [vmem:[#allocation5 + $0x108] sm:$0xff]
    %v118 = vld [vmem:[#allocation5 + $0x110] sm:$0xff]
    %v119 = vld [vmem:[#allocation5 + $0x118] sm:$0xff]
    %v120 = vld [vmem:[#allocation5 + $0x120] sm:$0xff]
    %v121 = vld [vmem:[#allocation5 + $0x128] sm:$0xff]
    %v122 = vld [vmem:[#allocation5 + $0x130] sm:$0xff]
    %v123 = vld [vmem:[#allocation5 + $0x138] sm:$0xff]
    %v124 = vld [vmem:[#allocation5 + $0x140] sm:$0xff]
    %v125 = vld [vmem:[#allocation5 + $0x148] sm:$0xff]
    %v126 = vld [vmem:[#allocation5 + $0x150] sm:$0xff]
    %v127 = vld [vmem:[#allocation5 + $0x158] sm:$0xff]
    %v128 = vld [vmem:[#allocation5 + $0x160] sm:$0xff]
    %v129 = vld [vmem:[#allocation5 + $0x168] sm:$0xff]
    %v130 = vld [vmem:[#allocation5 + $0x170] sm:$0xff]
    %v131 = vld [vmem:[#allocation5 + $0x178] sm:$0xff]
    %v132 = vld [vmem:[#allocation5 + $0x180] sm:$0xff]
    %v133 = vld [vmem:[#allocation5 + $0x188] sm:$0xff]
    %v134 = vld [vmem:[#allocation5 + $0x190] sm:$0xff]
    %v135 = vld [vmem:[#allocation5 + $0x198] sm:$0xff]
    %v136 = vld [vmem:[#allocation5 + $0x1a0] sm:$0xff]
    %v137 = vld [vmem:[#allocation5 + $0x1a8] sm:$0xff]
    %v138 = vld [vmem:[#allocation5 + $0x1b0] sm:$0xff]
    %v139 = vld [vmem:[#allocation5 + $0x1b8] sm:$0xff]
    %v140 = vld [vmem:[#allocation5 + $0x1c0] sm:$0xff]
    %v141 = vld [vmem:[#allocation5 + $0x1c8] sm:$0xff]
    %v142 = vld [vmem:[#allocation5 + $0x1d0] sm:$0xff]
    %v143 = vld [vmem:[#allocation5 + $0x1d8] sm:$0xff]
    %v144 = vld [vmem:[#allocation5 + $0x1e0] sm:$0xff]
    %v145 = vld [vmem:[#allocation5 + $0x1e8] sm:$0xff]
    %v146 = vld [vmem:[#allocation5 + $0x1f0] sm:$0xff]
    %v147 = vld [vmem:[#allocation5 + $0x1f8] sm:$0xff]
    %v148 = vld [vmem:[#allocation5 + $0x200] sm:$0xff]
    %v149 = vld [vmem:[#allocation5 + $0x208] sm:$0xff]
    %v150 = vld [vmem:[#allocation5 + $0x210] sm:$0xff]
    %v151 = vld [vmem:[#allocation5 + $0x218] sm:$0xff]
    %v152 = vld [vmem:[#allocation5 + $0x220] sm:$0xff]
    %v153 = vld [vmem:[#allocation5 + $0x228] sm:$0xff]
    %v154 = vld [vmem:[#allocation5 + $0x230] sm:$0xff]
    %v155 = vld [vmem:[#allocation5 + $0x238] sm:$0xff]
    %v156 = vld [vmem:[#allocation5 + $0x240] sm:$0xff]
    %v157 = vld [vmem:[#allocation5 + $0x248] sm:$0xff]
    %v158 = vld [vmem:[#allocation5 + $0x250] sm:$0xff]
    %v159 = vld [vmem:[#allocation5 + $0x258] sm:$0xff]
    %v160 = vld [vmem:[#allocation5 + $0x260] sm:$0xff]
    %v161 = vld [vmem:[#allocation5 + $0x268] sm:$0xff]
    %v162 = vld [vmem:[#allocation5 + $0x270] sm:$0xff]
    %v163 = vld [vmem:[#allocation5 + $0x278] sm:$0xff]
    %v164 = vld [vmem:[#allocation5 + $0x280] sm:$0xff]
    %v165 = vld [vmem:[#allocation5 + $0x288] sm:$0xff]
    %v166 = vld [vmem:[#allocation5 + $0x290] sm:$0xff]
    %v167 = vld [vmem:[#allocation5 + $0x298] sm:$0xff]
    %v168 = vld [vmem:[#allocation5 + $0x2a0] sm:$0xff]
    %v169 = vld [vmem:[#allocation5 + $0x2a8] sm:$0xff]
    %v170 = vld [vmem:[#allocation5 + $0x2b0] sm:$0xff]
    %v171 = vld [vmem:[#allocation5 + $0x2b8] sm:$0xff]
    %v172 = vld [vmem:[#allocation5 + $0x2c0] sm:$0xff]
    %v173 = vld [vmem:[#allocation5 + $0x2c8] sm:$0xff]
    %v174 = vld [vmem:[#allocation5 + $0x2d0] sm:$0xff]
    %v175 = vld [vmem:[#allocation5 + $0x2d8] sm:$0xff]
    %v176 = vld [vmem:[#allocation5 + $0x2e0] sm:$0xff]
    %v177 = vld [vmem:[#allocation5 + $0x2e8] sm:$0xff]
    %v178 = vld [vmem:[#allocation5 + $0x2f0] sm:$0xff]
    %v179 = vld [vmem:[#allocation5 + $0x2f8] sm:$0xff]
    %v180 = vld [vmem:[#allocation5 + $0x300] sm:$0xff]
    %v181 = vld [vmem:[#allocation5 + $0x308] sm:$0xff]
    %v182 = vld [vmem:[#allocation5 + $0x310] sm:$0xff]
    %v183 = vld [vmem:[#allocation5 + $0x318] sm:$0xff]
    %v184 = vld [vmem:[#allocation5 + $0x320] sm:$0xff]
    %v185 = vld [vmem:[#allocation5 + $0x328] sm:$0xff]
    %v186 = vld [vmem:[#allocation5 + $0x330] sm:$0xff]
    %v187 = vld [vmem:[#allocation5 + $0x338] sm:$0xff]
    %v188 = vld [vmem:[#allocation5 + $0x340] sm:$0xff]
    %v189 = vld [vmem:[#allocation5 + $0x348] sm:$0xff]
    %v190 = vld [vmem:[#allocation5 + $0x350] sm:$0xff]
    %v191 = vld [vmem:[#allocation5 + $0x358] sm:$0xff]
    %v192 = vld [vmem:[#allocation5 + $0x360] sm:$0xff]
    %v193 = vld [vmem:[#allocation5 + $0x368] sm:$0xff]
    %v194 = vld [vmem:[#allocation5 + $0x370] sm:$0xff]
    %v195 = vld [vmem:[#allocation5 + $0x378] sm:$0xff]
    %v196 = vld [vmem:[#allocation5 + $0x380] sm:$0xff]
    %v197 = vld [vmem:[#allocation5 + $0x388] sm:$0xff]
    %v198 = vld [vmem:[#allocation5 + $0x390] sm:$0xff]
    %v199 = vld [vmem:[#allocation5 + $0x398] sm:$0xff]
    %v200 = vld [vmem:[#allocation5 + $0x3a0] sm:$0xff]
    %v201 = vld [vmem:[#allocation5 + $0x3a8] sm:$0xff]
    %v202 = vld [vmem:[#allocation5 + $0x3b0] sm:$0xff]
    %v203 = vld [vmem:[#allocation5 + $0x3b8] sm:$0xff]
    %v204 = vld [vmem:[#allocation5 + $0x3c0] sm:$0xff]
    %v205 = vld [vmem:[#allocation5 + $0x3c8] sm:$0xff]
    %v206 = vld [vmem:[#allocation5 + $0x3d0] sm:$0xff]
    %v207 = vld [vmem:[#allocation5 + $0x3d8] sm:$0xff]
    %v208 = vld [vmem:[#allocation5 + $0x3e0] sm:$0xff]
    %v209 = vld [vmem:[#allocation5 + $0x3e8] sm:$0xff]
    %v210 = vld [vmem:[#allocation5 + $0x3f0] sm:$0xff]
    %v211 = vld [vmem:[#allocation5 + $0x3f8] sm:$0xff]
    %v212 = vld [vmem:[#allocation5 + $0x400] sm:$0xff]
    %v213 = vld [vmem:[#allocation5 + $0x408] sm:$0xff]
    %v214 = vld [vmem:[#allocation5 + $0x410] sm:$0xff]
    %v215 = vld [vmem:[#allocation5 + $0x418] sm:$0xff]
    %v216 = vld [vmem:[#allocation5 + $0x420] sm:$0xff]
    %v217 = vld [vmem:[#allocation5 + $0x428] sm:$0xff]
    %v218 = vld [vmem:[#allocation5 + $0x430] sm:$0xff]
    %v219 = vld [vmem:[#allocation5 + $0x438] sm:$0xff]
    %v220 = vld [vmem:[#allocation5 + $0x440] sm:$0xff]
    %v221 = vld [vmem:[#allocation5 + $0x448] sm:$0xff]
    %v222 = vld [vmem:[#allocation5 + $0x450] sm:$0xff]
    %v223 = vld [vmem:[#allocation5 + $0x458] sm:$0xff]
    %v224 = vld [vmem:[#allocation5 + $0x460] sm:$0xff]
    %v225 = vld [vmem:[#allocation5 + $0x468] sm:$0xff]
    %v226 = vld [vmem:[#allocation5 + $0x470] sm:$0xff]
    %v227 = vld [vmem:[#allocation5 + $0x478] sm:$0xff]
    %v228 = vld [vmem:[#allocation5 + $0x480] sm:$0xff]
    %v229 = vld [vmem:[#allocation5 + $0x488] sm:$0xff]
    %v230 = vld [vmem:[#allocation5 + $0x490] sm:$0xff]
    %v231 = vld [vmem:[#allocation5 + $0x498] sm:$0xff]
    %v232 = vld [vmem:[#allocation5 + $0x4a0] sm:$0xff]
    %v233 = vld [vmem:[#allocation5 + $0x4a8] sm:$0xff]
    %v234 = vld [vmem:[#allocation5 + $0x4b0] sm:$0xff]
    %v235 = vld [vmem:[#allocation5 + $0x4b8] sm:$0xff]
    %v236 = vld [vmem:[#allocation5 + $0x4c0] sm:$0xff]
    %v237 = vld [vmem:[#allocation5 + $0x4c8] sm:$0xff]
    %v238 = vld [vmem:[#allocation5 + $0x4d0] sm:$0xff]
    %v239 = vld [vmem:[#allocation5 + $0x4d8] sm:$0xff]
    %v240 = vld [vmem:[#allocation5 + $0x4e0] sm:$0xff]
    %v241 = vld [vmem:[#allocation5 + $0x4e8] sm:$0xff]
    %v242 = vld [vmem:[#allocation5 + $0x4f0] sm:$0xff]
    %v243 = vld [vmem:[#allocation5 + $0x4f8] sm:$0xff]
    %v244 = vld [vmem:[#allocation5 + $0x500] sm:$0xff]
    %v245 = vld [vmem:[#allocation5 + $0x508] sm:$0xff]
    %v246 = vld [vmem:[#allocation5 + $0x510] sm:$0xff]
    %v247 = vld [vmem:[#allocation5 + $0x518] sm:$0xff]
    %v248 = vld [vmem:[#allocation5 + $0x520] sm:$0xff]
    %v249 = vld [vmem:[#allocation5 + $0x528] sm:$0xff]
    %v250 = vld [vmem:[#allocation5 + $0x530] sm:$0xff]
    %v251 = vld [vmem:[#allocation5 + $0x538] sm:$0xff]
    %v252 = vld [vmem:[#allocation5 + $0x540] sm:$0xff]
    %v253 = vld [vmem:[#allocation5 + $0x548] sm:$0xff]
    %v254 = vld [vmem:[#allocation5 + $0x550] sm:$0xff]
    %v255 = vld [vmem:[#allocation5 + $0x558] sm:$0xff]
    %v256 = vld [vmem:[#allocation5 + $0x560] sm:$0xff]
    %v257 = vld [vmem:[#allocation5 + $0x568] sm:$0xff]
    %v258 = vld [vmem:[#allocation5 + $0x570] sm:$0xff]
    %v259 = vld [vmem:[#allocation5 + $0x578] sm:$0xff]
    %v260 = vld [vmem:[#allocation5 + $0x580] sm:$0xff]
    %v261 = vld [vmem:[#allocation5 + $0x588] sm:$0xff]
    %v262 = vld [vmem:[#allocation5 + $0x590] sm:$0xff]
    %v263 = vld [vmem:[#allocation5 + $0x598] sm:$0xff]
    %v264 = vld [vmem:[#allocation5 + $0x5a0] sm:$0xff]
    %v265 = vld [vmem:[#allocation5 + $0x5a8] sm:$0xff]
    %v266 = vld [vmem:[#allocation5 + $0x5b0] sm:$0xff]
    %v267 = vld [vmem:[#allocation5 + $0x5b8] sm:$0xff]
    %v268 = vld [vmem:[#allocation5 + $0x5c0] sm:$0xff]
    %v269 = vld [vmem:[#allocation5 + $0x5c8] sm:$0xff]
    %v270 = vld [vmem:[#allocation5 + $0x5d0] sm:$0xff]
    %v271 = vld [vmem:[#allocation5 + $0x5d8] sm:$0xff]
    %v272 = vld [vmem:[#allocation5 + $0x5e0] sm:$0xff]
    %v273 = vld [vmem:[#allocation5 + $0x5e8] sm:$0xff]
    %v274 = vld [vmem:[#allocation5 + $0x5f0] sm:$0xff]
    %v275 = vld [vmem:[#allocation5 + $0x5f8] sm:$0xff]
    %v276 = vld [vmem:[#allocation5 + $0x600] sm:$0xff]
    %v277 = vld [vmem:[#allocation5 + $0x608] sm:$0xff]
    %v278 = vld [vmem:[#allocation5 + $0x610] sm:$0xff]
    %v279 = vld [vmem:[#allocation5 + $0x618] sm:$0xff]
    %v280 = vld [vmem:[#allocation5 + $0x620] sm:$0xff]
    %v281 = vld [vmem:[#allocation5 + $0x628] sm:$0xff]
    %v282 = vld [vmem:[#allocation5 + $0x630] sm:$0xff]
    %v283 = vld [vmem:[#allocation5 + $0x638] sm:$0xff]
    %v284 = vld [vmem:[#allocation5 + $0x640] sm:$0xff]
    %v285 = vld [vmem:[#allocation5 + $0x648] sm:$0xff]
    %v286 = vld [vmem:[#allocation5 + $0x650] sm:$0xff]
    %v287 = vld [vmem:[#allocation5 + $0x658] sm:$0xff]
    %v288 = vld [vmem:[#allocation5 + $0x660] sm:$0xff]
    %v289 = vld [vmem:[#allocation5 + $0x668] sm:$0xff]
    %v290 = vld [vmem:[#allocation5 + $0x670] sm:$0xff]
    %v291 = vld [vmem:[#allocation5 + $0x678] sm:$0xff]
    %v292 = vld [vmem:[#allocation5 + $0x680] sm:$0xff]
    %v293 = vld [vmem:[#allocation5 + $0x688] sm:$0xff]
    %v294 = vld [vmem:[#allocation5 + $0x690] sm:$0xff]
    %v295 = vld [vmem:[#allocation5 + $0x698] sm:$0xff]
    %v296 = vld [vmem:[#allocation5 + $0x6a0] sm:$0xff]
    %v297 = vld [vmem:[#allocation5 + $0x6a8] sm:$0xff]
    %v298 = vld [vmem:[#allocation5 + $0x6b0] sm:$0xff]
    %v299 = vld [vmem:[#allocation5 + $0x6b8] sm:$0xff]
    %v300 = vld [vmem:[#allocation5 + $0x6c0] sm:$0xff]
    %v301 = vld [vmem:[#allocation5 + $0x6c8] sm:$0xff]
    %v302 = vld [vmem:[#allocation5 + $0x6d0] sm:$0xff]
    %v303 = vld [vmem:[#allocation5 + $0x6d8] sm:$0xff]
    %v304 = vld [vmem:[#allocation5 + $0x6e0] sm:$0xff]
    %v305 = vld [vmem:[#allocation5 + $0x6e8] sm:$0xff]
    %v306 = vld [vmem:[#allocation5 + $0x6f0] sm:$0xff]
    %v307 = vld [vmem:[#allocation5 + $0x6f8] sm:$0xff]
    %v308 = vld [vmem:[#allocation5 + $0x700] sm:$0xff]
    %v309 = vld [vmem:[#allocation5 + $0x708] sm:$0xff]
    %v310 = vld [vmem:[#allocation5 + $0x710] sm:$0xff]
    %v311 = vld [vmem:[#allocation5 + $0x718] sm:$0xff]
    %v312 = vld [vmem:[#allocation5 + $0x720] sm:$0xff]
    %v313 = vld [vmem:[#allocation5 + $0x728] sm:$0xff]
    %v314 = vld [vmem:[#allocation5 + $0x730] sm:$0xff]
    %v315 = vld [vmem:[#allocation5 + $0x738] sm:$0xff]
    %v316 = vld [vmem:[#allocation5 + $0x740] sm:$0xff]
    %v317 = vld [vmem:[#allocation5 + $0x748] sm:$0xff]
    %v318 = vld [vmem:[#allocation5 + $0x750] sm:$0xff]
    %v319 = vld [vmem:[#allocation5 + $0x758] sm:$0xff]
    %v320 = vld [vmem:[#allocation5 + $0x760] sm:$0xff]
    %v321 = vld [vmem:[#allocation5 + $0x768] sm:$0xff]
    %v322 = vld [vmem:[#allocation5 + $0x770] sm:$0xff]
    %v323 = vld [vmem:[#allocation5 + $0x778] sm:$0xff]
    %v324 = vld [vmem:[#allocation5 + $0x780] sm:$0xff]
    %v325 = vld [vmem:[#allocation5 + $0x788] sm:$0xff]
    %v326 = vld [vmem:[#allocation5 + $0x790] sm:$0xff]
    %v327 = vld [vmem:[#allocation5 + $0x798] sm:$0xff]
    %v328 = vld [vmem:[#allocation5 + $0x7a0] sm:$0xff]
    %v329 = vld [vmem:[#allocation5 + $0x7a8] sm:$0xff]
    %v330 = vld [vmem:[#allocation5 + $0x7b0] sm:$0xff]
    %v331 = vld [vmem:[#allocation5 + $0x7b8] sm:$0xff]
    %v332 = vld [vmem:[#allocation5 + $0x7c0] sm:$0xff]
    %v333 = vld [vmem:[#allocation5 + $0x7c8] sm:$0xff]
    %v334 = vld [vmem:[#allocation5 + $0x7d0] sm:$0xff]
    %v335 = vld [vmem:[#allocation5 + $0x7d8] sm:$0xff]
    %v336 = vld [vmem:[#allocation5 + $0x7e0] sm:$0xff]
    %v337 = vld [vmem:[#allocation5 + $0x7e8] sm:$0xff]
    %v338 = vld [vmem:[#allocation5 + $0x7f0] sm:$0xff]
    %v339 = vld [vmem:[#allocation5 + $0x7f8] sm:$0xff]
    %v340 = vld [vmem:[#allocation5 + $0x800] sm:$0xff]
    %v341 = vld [vmem:[#allocation5 + $0x808] sm:$0xff]
    %v342 = vld [vmem:[#allocation5 + $0x810] sm:$0xff]
    %v343 = vld [vmem:[#allocation5 + $0x818] sm:$0xff]
    %v344 = vld [vmem:[#allocation5 + $0x820] sm:$0xff]
    %v345 = vld [vmem:[#allocation5 + $0x828] sm:$0xff]
    %v346 = vld [vmem:[#allocation5 + $0x830] sm:$0xff]
    %v347 = vld [vmem:[#allocation5 + $0x838] sm:$0xff]
    %v348 = vld [vmem:[#allocation5 + $0x840] sm:$0xff]
    %v349 = vld [vmem:[#allocation5 + $0x848] sm:$0xff]
    %v350 = vld [vmem:[#allocation5 + $0x850] sm:$0xff]
    %v351 = vld [vmem:[#allocation5 + $0x858] sm:$0xff]
    %v352 = vld [vmem:[#allocation5 + $0x860] sm:$0xff]
    %v353 = vld [vmem:[#allocation5 + $0x868] sm:$0xff]
    %v354 = vld [vmem:[#allocation5 + $0x870] sm:$0xff]
    %v355 = vld [vmem:[#allocation5 + $0x878] sm:$0xff]
    %v356 = vld [vmem:[#allocation5 + $0x880] sm:$0xff]
    %v357 = vld [vmem:[#allocation5 + $0x888] sm:$0xff]
    %v358 = vld [vmem:[#allocation5 + $0x890] sm:$0xff]
    %v359 = vld [vmem:[#allocation5 + $0x898] sm:$0xff]
    %v360 = vld [vmem:[#allocation5 + $0x8a0] sm:$0xff]
    %v361 = vld [vmem:[#allocation5 + $0x8a8] sm:$0xff]
    %v362 = vld [vmem:[#allocation5 + $0x8b0] sm:$0xff]
    %v363 = vld [vmem:[#allocation5 + $0x8b8] sm:$0xff]
    %v364 = vld [vmem:[#allocation5 + $0x8c0] sm:$0xff]
    %v365 = vld [vmem:[#allocation5 + $0x8c8] sm:$0xff]
    %v366 = vld [vmem:[#allocation5 + $0x8d0] sm:$0xff]
    %v367 = vld [vmem:[#allocation5 + $0x8d8] sm:$0xff]
    %v368 = vld [vmem:[#allocation5 + $0x8e0] sm:$0xff]
    %v369 = vld [vmem:[#allocation5 + $0x8e8] sm:$0xff]
    %v370 = vld [vmem:[#allocation5 + $0x8f0] sm:$0xff]
    %v371 = vld [vmem:[#allocation5 + $0x8f8] sm:$0xff]
    %v372 = vld [vmem:[#allocation5 + $0x900] sm:$0xff]
    %v373 = vld [vmem:[#allocation5 + $0x908] sm:$0xff]
    %v374 = vld [vmem:[#allocation5 + $0x910] sm:$0xff]
    %v375 = vld [vmem:[#allocation5 + $0x918] sm:$0xff]
    %v376 = vld [vmem:[#allocation5 + $0x920] sm:$0xff]
    %v377 = vld [vmem:[#allocation5 + $0x928] sm:$0xff]
    %v378 = vld [vmem:[#allocation5 + $0x930] sm:$0xff]
    %v379 = vld [vmem:[#allocation5 + $0x938] sm:$0xff]
    %v380 = vld [vmem:[#allocation5 + $0x940] sm:$0xff]
    %v381 = vld [vmem:[#allocation5 + $0x948] sm:$0xff]
    %v382 = vld [vmem:[#allocation5 + $0x950] sm:$0xff]
    %v383 = vld [vmem:[#allocation5 + $0x958] sm:$0xff]
    %v384 = vld [vmem:[#allocation5 + $0x960] sm:$0xff]
    %v385 = vld [vmem:[#allocation5 + $0x968] sm:$0xff]
    %v386 = vld [vmem:[#allocation5 + $0x970] sm:$0xff]
    %v387 = vld [vmem:[#allocation5 + $0x978] sm:$0xff]
    %v388 = vld [vmem:[#allocation5 + $0x980] sm:$0xff]
    %v389 = vld [vmem:[#allocation5 + $0x988] sm:$0xff]
    %v390 = vld [vmem:[#allocation5 + $0x990] sm:$0xff]
    %v391 = vld [vmem:[#allocation5 + $0x998] sm:$0xff]
    %v392 = vld [vmem:[#allocation5 + $0x9a0] sm:$0xff]
    %v393 = vld [vmem:[#allocation5 + $0x9a8] sm:$0xff]
    %v394 = vld [vmem:[#allocation5 + $0x9b0] sm:$0xff]
    %v395 = vld [vmem:[#allocation5 + $0x9b8] sm:$0xff]
    %v396 = vld [vmem:[#allocation5 + $0x9c0] sm:$0xff]
    %v397 = vld [vmem:[#allocation5 + $0x9c8] sm:$0xff]
    %v398 = vld [vmem:[#allocation5 + $0x9d0] sm:$0xff]
    %v399 = vld [vmem:[#allocation5 + $0x9d8] sm:$0xff]
    %v400 = vld [vmem:[#allocation5 + $0x9e0] sm:$0xff]
    %v401 = vld [vmem:[#allocation5 + $0x9e8] sm:$0xff]
    %v402 = vld [vmem:[#allocation5 + $0x9f0] sm:$0xff]
    %v403 = vld [vmem:[#allocation5 + $0x9f8] sm:$0xff]
    %v404 = vld [vmem:[#allocation5 + $0xa00] sm:$0xff]
    %v405 = vld [vmem:[#allocation5 + $0xa08] sm:$0xff]
    %v406 = vld [vmem:[#allocation5 + $0xa10] sm:$0xff]
    %v407 = vld [vmem:[#allocation5 + $0xa18] sm:$0xff]
    %v408 = vld [vmem:[#allocation5 + $0xa20] sm:$0xff]
    %v409 = vld [vmem:[#allocation5 + $0xa28] sm:$0xff]
    %v410 = vld [vmem:[#allocation5 + $0xa30] sm:$0xff]
    %v411 = vld [vmem:[#allocation5 + $0xa38] sm:$0xff]
    %v412 = vld [vmem:[#allocation5 + $0xa40] sm:$0xff]
    %v413 = vld [vmem:[#allocation5 + $0xa48] sm:$0xff]
    %v414 = vld [vmem:[#allocation5 + $0xa50] sm:$0xff]
    %v415 = vld [vmem:[#allocation5 + $0xa58] sm:$0xff]
    %v416 = vld [vmem:[#allocation5 + $0xa60] sm:$0xff]
    %v417 = vld [vmem:[#allocation5 + $0xa68] sm:$0xff]
    %v418 = vld [vmem:[#allocation5 + $0xa70] sm:$0xff]
    %v419 = vld [vmem:[#allocation5 + $0xa78] sm:$0xff]
    %v420 = vld [vmem:[#allocation5 + $0xa80] sm:$0xff]
    %v421 = vld [vmem:[#allocation5 + $0xa88] sm:$0xff]
    %v422 = vld [vmem:[#allocation5 + $0xa90] sm:$0xff]
    %v423 = vld [vmem:[#allocation5 + $0xa98] sm:$0xff]
    %v424 = vld [vmem:[#allocation5 + $0xaa0] sm:$0xff]
    %v425 = vld [vmem:[#allocation5 + $0xaa8] sm:$0xff]
    %v426 = vld [vmem:[#allocation5 + $0xab0] sm:$0xff]
    %v427 = vld [vmem:[#allocation5 + $0xab8] sm:$0xff]
    %v428 = vld [vmem:[#allocation5 + $0xac0] sm:$0xff]
    %v429 = vld [vmem:[#allocation5 + $0xac8] sm:$0xff]
    %v430 = vld [vmem:[#allocation5 + $0xad0] sm:$0xff]
    %v431 = vld [vmem:[#allocation5 + $0xad8] sm:$0xff]
    %v432 = vld [vmem:[#allocation5 + $0xae0] sm:$0xff]
    %v433 = vld [vmem:[#allocation5 + $0xae8] sm:$0xff]
    %v434 = vld [vmem:[#allocation5 + $0xaf0] sm:$0xff]
    %v435 = vld [vmem:[#allocation5 + $0xaf8] sm:$0xff]
    %v436 = vld [vmem:[#allocation5 + $0xb00] sm:$0xff]
    %v437 = vld [vmem:[#allocation5 + $0xb08] sm:$0xff]
    %v438 = vld [vmem:[#allocation5 + $0xb10] sm:$0xff]
    %v439 = vld [vmem:[#allocation5 + $0xb18] sm:$0xff]
    %v440 = vld [vmem:[#allocation5 + $0xb20] sm:$0xff]
    %v441 = vld [vmem:[#allocation5 + $0xb28] sm:$0xff]
    %v442 = vld [vmem:[#allocation5 + $0xb30] sm:$0xff]
    %v443 = vld [vmem:[#allocation5 + $0xb38] sm:$0xff]
    %v444 = vld [vmem:[#allocation5 + $0xb40] sm:$0xff]
    %v445 = vld [vmem:[#allocation5 + $0xb48] sm:$0xff]
    %v446 = vld [vmem:[#allocation5 + $0xb50] sm:$0xff]
    %v447 = vld [vmem:[#allocation5 + $0xb58] sm:$0xff]
    %v448 = vld [vmem:[#allocation5 + $0xb60] sm:$0xff]
    %v449 = vld [vmem:[#allocation5 + $0xb68] sm:$0xff]
    %v450 = vld [vmem:[#allocation5 + $0xb70] sm:$0xff]
    %v451 = vld [vmem:[#allocation5 + $0xb78] sm:$0xff]
    %v452 = vld [vmem:[#allocation5 + $0xb80] sm:$0xff]
    %v453 = vld [vmem:[#allocation5 + $0xb88] sm:$0xff]
    %v454 = vld [vmem:[#allocation5 + $0xb90] sm:$0xff]
    %v455 = vld [vmem:[#allocation5 + $0xb98] sm:$0xff]
    %v456 = vld [vmem:[#allocation5 + $0xba0] sm:$0xff]
    %v457 = vld [vmem:[#allocation5 + $0xba8] sm:$0xff]
    %v458 = vld [vmem:[#allocation5 + $0xbb0] sm:$0xff]
    %v459 = vld [vmem:[#allocation5 + $0xbb8] sm:$0xff]
    %v460 = vld [vmem:[#allocation5 + $0xbc0] sm:$0xff]
    %v461 = vld [vmem:[#allocation5 + $0xbc8] sm:$0xff]
    %v462 = vld [vmem:[#allocation5 + $0xbd0] sm:$0xff]
    %v463 = vld [vmem:[#allocation5 + $0xbd8] sm:$0xff]
    %v464 = vld [vmem:[#allocation5 + $0xbe0] sm:$0xff]
    %v465 = vld [vmem:[#allocation5 + $0xbe8] sm:$0xff]
    %v466 = vld [vmem:[#allocation5 + $0xbf0] sm:$0xff]
    %v467 = vld [vmem:[#allocation5 + $0xbf8] sm:$0xff]
    %v468 = vld [vmem:[#allocation5 + $0xc00] sm:$0xff]
    %v469 = vld [vmem:[#allocation5 + $0xc08] sm:$0xff]
    %v470 = vld [vmem:[#allocation5 + $0xc10] sm:$0xff]
    %v471 = vld [vmem:[#allocation5 + $0xc18] sm:$0xff]
    %v472 = vld [vmem:[#allocation5 + $0xc20] sm:$0xff]
    %v473 = vld [vmem:[#allocation5 + $0xc28] sm:$0xff]
    %v474 = vld [vmem:[#allocation5 + $0xc30] sm:$0xff]
    %v475 = vld [vmem:[#allocation5 + $0xc38] sm:$0xff]
    %v476 = vld [vmem:[#allocation5 + $0xc40] sm:$0xff]
    %v477 = vld [vmem:[#allocation5 + $0xc48] sm:$0xff]
    %v478 = vld [vmem:[#allocation5 + $0xc50] sm:$0xff]
    %v479 = vld [vmem:[#allocation5 + $0xc58] sm:$0xff]
    %v480 = vld [vmem:[#allocation5 + $0xc60] sm:$0xff]
    %v481 = vld [vmem:[#allocation5 + $0xc68] sm:$0xff]
    %v482 = vld [vmem:[#allocation5 + $0xc70] sm:$0xff]
    %v483 = vld [vmem:[#allocation5 + $0xc78] sm:$0xff]
    %v484 = vld [vmem:[#allocation5 + $0xc80] sm:$0xff]
    %v485 = vld [vmem:[#allocation5 + $0xc88] sm:$0xff]
    %v486 = vld [vmem:[#allocation5 + $0xc90] sm:$0xff]
    %v487 = vld [vmem:[#allocation5 + $0xc98] sm:$0xff]
    %v488 = vld [vmem:[#allocation5 + $0xca0] sm:$0xff]
    %v489 = vld [vmem:[#allocation5 + $0xca8] sm:$0xff]
    %v490 = vld [vmem:[#allocation5 + $0xcb0] sm:$0xff]
    %v491 = vld [vmem:[#allocation5 + $0xcb8] sm:$0xff]
    %v492 = vld [vmem:[#allocation5 + $0xcc0] sm:$0xff]
    %v493 = vld [vmem:[#allocation5 + $0xcc8] sm:$0xff]
    %v494 = vld [vmem:[#allocation5 + $0xcd0] sm:$0xff]
    %v495 = vld [vmem:[#allocation5 + $0xcd8] sm:$0xff]
    %v496 = vld [vmem:[#allocation5 + $0xce0] sm:$0xff]
    %v497 = vld [vmem:[#allocation5 + $0xce8] sm:$0xff]
    %v498 = vld [vmem:[#allocation5 + $0xcf0] sm:$0xff]
    %v499 = vld [vmem:[#allocation5 + $0xcf8] sm:$0xff]
    %v500 = vld [vmem:[#allocation5 + $0xd00] sm:$0xff]
    %v501 = vld [vmem:[#allocation5 + $0xd08] sm:$0xff]
    %v502 = vld [vmem:[#allocation5 + $0xd10] sm:$0xff]
    %v503 = vld [vmem:[#allocation5 + $0xd18] sm:$0xff]
    %v504 = vld [vmem:[#allocation5 + $0xd20] sm:$0xff]
    %v505 = vld [vmem:[#allocation5 + $0xd28] sm:$0xff]
    %v506 = vld [vmem:[#allocation5 + $0xd30] sm:$0xff]
    %v507 = vld [vmem:[#allocation5 + $0xd38] sm:$0xff]
    %v508 = vld [vmem:[#allocation5 + $0xd40] sm:$0xff]
    %v509 = vld [vmem:[#allocation5 + $0xd48] sm:$0xff]
    %v510 = vld [vmem:[#allocation5 + $0xd50] sm:$0xff]
    %v511 = vld [vmem:[#allocation5 + $0xd58] sm:$0xff]
    %v512 = vld [vmem:[#allocation5 + $0xd60] sm:$0xff]
    %v513 = vld [vmem:[#allocation5 + $0xd68] sm:$0xff]
    %v514 = vld [vmem:[#allocation5 + $0xd70] sm:$0xff]
    %v515 = vld [vmem:[#allocation5 + $0xd78] sm:$0xff]
    %v516 = vld [vmem:[#allocation5 + $0xd80] sm:$0xff]
    %v517 = vld [vmem:[#allocation5 + $0xd88] sm:$0xff]
    %v518 = vld [vmem:[#allocation5 + $0xd90] sm:$0xff]
    %v519 = vld [vmem:[#allocation5 + $0xd98] sm:$0xff]
    %v520 = vld [vmem:[#allocation5 + $0xda0] sm:$0xff]
    %v521 = vld [vmem:[#allocation5 + $0xda8] sm:$0xff]
    %v522 = vld [vmem:[#allocation5 + $0xdb0] sm:$0xff]
    %v523 = vld [vmem:[#allocation5 + $0xdb8] sm:$0xff]
    %v524 = vld [vmem:[#allocation5 + $0xdc0] sm:$0xff]
    %v525 = vld [vmem:[#allocation5 + $0xdc8] sm:$0xff]
    %v526 = vld [vmem:[#allocation5 + $0xdd0] sm:$0xff]
    %v527 = vld [vmem:[#allocation5 + $0xdd8] sm:$0xff]
    %v528 = vld [vmem:[#allocation5 + $0xde0] sm:$0xff]
    %v529 = vld [vmem:[#allocation5 + $0xde8] sm:$0xff]
    %v530 = vld [vmem:[#allocation5 + $0xdf0] sm:$0xff]
    %v531 = vld [vmem:[#allocation5 + $0xdf8] sm:$0xff]
    %v532 = vld [vmem:[#allocation5 + $0xe00] sm:$0xff]
    %v533 = vld [vmem:[#allocation5 + $0xe08] sm:$0xff]
    %v534 = vld [vmem:[#allocation5 + $0xe10] sm:$0xff]
    %v535 = vld [vmem:[#allocation5 + $0xe18] sm:$0xff]
    %v536 = vld [vmem:[#allocation5 + $0xe20] sm:$0xff]
    %v537 = vld [vmem:[#allocation5 + $0xe28] sm:$0xff]
    %v538 = vld [vmem:[#allocation5 + $0xe30] sm:$0xff]
    %v539 = vld [vmem:[#allocation5 + $0xe38] sm:$0xff]
    %v540 = vld [vmem:[#allocation5 + $0xe40] sm:$0xff]
    %v541 = vld [vmem:[#allocation5 + $0xe48] sm:$0xff]
    %v542 = vld [vmem:[#allocation5 + $0xe50] sm:$0xff]
    %v543 = vld [vmem:[#allocation5 + $0xe58] sm:$0xff]
    %v544 = vld [vmem:[#allocation5 + $0xe60] sm:$0xff]
    %v545 = vld [vmem:[#allocation5 + $0xe68] sm:$0xff]
    %v546 = vld [vmem:[#allocation5 + $0xe70] sm:$0xff]
    %v547 = vld [vmem:[#allocation5 + $0xe78] sm:$0xff]
    %v548 = vld [vmem:[#allocation5 + $0xe80] sm:$0xff]
    %v549 = vld [vmem:[#allocation5 + $0xe88] sm:$0xff]
    %v550 = vld [vmem:[#allocation5 + $0xe90] sm:$0xff]
    %v551 = vld [vmem:[#allocation5 + $0xe98] sm:$0xff]
    %v552 = vld [vmem:[#allocation5 + $0xea0] sm:$0xff]
    %v553 = vld [vmem:[#allocation5 + $0xea8] sm:$0xff]
    %v554 = vld [vmem:[#allocation5 + $0xeb0] sm:$0xff]
    %v555 = vld [vmem:[#allocation5 + $0xeb8] sm:$0xff]
    %v556 = vld [vmem:[#allocation5 + $0xec0] sm:$0xff]
    %v557 = vld [vmem:[#allocation5 + $0xec8] sm:$0xff]
    %v558 = vld [vmem:[#allocation5 + $0xed0] sm:$0xff]
    %v559 = vld [vmem:[#allocation5 + $0xed8] sm:$0xff]
    %v560 = vld [vmem:[#allocation5 + $0xee0] sm:$0xff]
    %v561 = vld [vmem:[#allocation5 + $0xee8] sm:$0xff]
    %v562 = vld [vmem:[#allocation5 + $0xef0] sm:$0xff]
    %v563 = vld [vmem:[#allocation5 + $0xef8] sm:$0xff]
    %v564 = vld [vmem:[#allocation5 + $0xf00] sm:$0xff]
    %v565 = vld [vmem:[#allocation5 + $0xf08] sm:$0xff]
    %v566 = vld [vmem:[#allocation5 + $0xf10] sm:$0xff]
    %v567 = vld [vmem:[#allocation5 + $0xf18] sm:$0xff]
    %v568 = vld [vmem:[#allocation5 + $0xf20] sm:$0xff]
    %v569 = vld [vmem:[#allocation5 + $0xf28] sm:$0xff]
    %v570 = vld [vmem:[#allocation5 + $0xf30] sm:$0xff]
    %v571 = vld [vmem:[#allocation5 + $0xf38] sm:$0xff]
    %v572 = vld [vmem:[#allocation5 + $0xf40] sm:$0xff]
    %v573 = vld [vmem:[#allocation5 + $0xf48] sm:$0xff]
    %v574 = vld [vmem:[#allocation5 + $0xf50] sm:$0xff]
    %v575 = vld [vmem:[#allocation5 + $0xf58] sm:$0xff]
    %v576 = vld [vmem:[#allocation5 + $0xf60] sm:$0xff]
    %v577 = vld [vmem:[#allocation5 + $0xf68] sm:$0xff]
    %v578 = vld [vmem:[#allocation5 + $0xf70] sm:$0xff]
    %v579 = vld [vmem:[#allocation5 + $0xf78] sm:$0xff]
    %v580 = vld [vmem:[#allocation5 + $0xf80] sm:$0xff]
    %v581 = vld [vmem:[#allocation5 + $0xf88] sm:$0xff]
    %v582 = vld [vmem:[#allocation5 + $0xf90] sm:$0xff]
    %v583 = vld [vmem:[#allocation5 + $0xf98] sm:$0xff]
    %v584 = vld [vmem:[#allocation5 + $0xfa0] sm:$0xff]
    %v585 = vld [vmem:[#allocation5 + $0xfa8] sm:$0xff]
    %v586 = vld [vmem:[#allocation5 + $0xfb0] sm:$0xff]
    %v587 = vld [vmem:[#allocation5 + $0xfb8] sm:$0xff]
    %v588 = vld [vmem:[#allocation5 + $0xfc0] sm:$0xff]
    %v589 = vld [vmem:[#allocation5 + $0xfc8] sm:$0xff]
    %v590 = vld [vmem:[#allocation5 + $0xfd0] sm:$0xff]
    %v591 = vld [vmem:[#allocation5 + $0xfd8] sm:$0xff]
    %v592 = vld [vmem:[#allocation5 + $0xfe0] sm:$0xff]
    %v593 = vld [vmem:[#allocation5 + $0xfe8] sm:$0xff]
    %v594 = vld [vmem:[#allocation5 + $0xff0] sm:$0xff]
    %v595 = vld [vmem:[#allocation5 + $0xff8] sm:$0xff]
    %v598 = vunpack.c.l.s4 1983009808
    %v599 = vunpack.c.0.s8 %v598
    %v600 = vlaneseq
    %v601 = vshrl.u32 %v600, 7
    %v602 = vsub.s32 %v599, %v601
    %v603 = vrot.slane %v83, %v602
    %v604 = vcombine.high %v603, %v603
    %607 = vmatprep.subr.mxu0 %v85
    %608 = vmatpush1.msra.mxu0 %v84
    %609 = vmatprep.subr.mxu0 %v101
    %610 = vmatpush1.msra.mxu0 %v100
    %611 = vmatprep.subr.mxu0 %v117
    %612 = vmatpush1.msra.mxu0 %v116
    %613 = vmatprep.subr.mxu0 %v133
    %614 = vmatpush1.msra.mxu0 %v132
    %615 = vmatprep.subr.mxu0 %v149
    %616 = vmatpush1.msra.mxu0 %v148
    %617 = vmatprep.subr.mxu0 %v165
    %618 = vmatpush1.msra.mxu0 %v164
    %619 = vmatprep.subr.mxu0 %v181
    %620 = vmatpush1.msra.mxu0 %v180
    %621 = vmatprep.subr.mxu0 %v197
    %622 = vmatpush1.msra.mxu0 %v196
    %623 = vmatprep.subr.mxu0 %v213
    %624 = vmatpush1.msra.mxu0 %v212
    %625 = vmatprep.subr.mxu0 %v229
    %626 = vmatpush1.msra.mxu0 %v228
    %627 = vmatprep.subr.mxu0 %v245
    %628 = vmatpush1.msra.mxu0 %v244
    %629 = vmatprep.subr.mxu0 %v261
    %630 = vmatpush1.msra.mxu0 %v260
    %631 = vmatprep.subr.mxu0 %v277
    %632 = vmatpush1.msra.mxu0 %v276
    %633 = vmatprep.subr.mxu0 %v293
    %634 = vmatpush1.msra.mxu0 %v292
    %635 = vmatprep.subr.mxu0 %v309
    %636 = vmatpush1.msra.mxu0 %v308
    %637 = vmatprep.subr.mxu0 %v325
    %638 = vmatpush1.msra.mxu0 %v324
    %639 = vmatprep.subr.mxu0 %v341
    %640 = vmatpush1.msra.mxu0 %v340
    %641 = vmatprep.subr.mxu0 %v357
    %642 = vmatpush1.msra.mxu0 %v356
    %643 = vmatprep.subr.mxu0 %v373
    %644 = vmatpush1.msra.mxu0 %v372
    %645 = vmatprep.subr.mxu0 %v389
    %646 = vmatpush1.msra.mxu0 %v388
    %647 = vmatprep.subr.mxu0 %v405
    %648 = vmatpush1.msra.mxu0 %v404
    %649 = vmatprep.subr.mxu0 %v421
    %650 = vmatpush1.msra.mxu0 %v420
    %651 = vmatprep.subr.mxu0 %v437
    %652 = vmatpush1.msra.mxu0 %v436
    %653 = vmatprep.subr.mxu0 %v453
    %654 = vmatpush1.msra.mxu0 %v452
    %655 = vmatprep.subr.mxu0 %v469
    %656 = vmatpush1.msra.mxu0 %v468
    %657 = vmatprep.subr.mxu0 %v485
    %658 = vmatpush1.msra.mxu0 %v484
    %659 = vmatprep.subr.mxu0 %v501
    %660 = vmatpush1.msra.mxu0 %v500
    %661 = vmatprep.subr.mxu0 %v517
    %662 = vmatpush1.msra.mxu0 %v516
    %663 = vmatprep.subr.mxu0 %v533
    %664 = vmatpush1.msra.mxu0 %v532
    %665 = vmatprep.subr.mxu0 %v549
    %666 = vmatpush1.msra.mxu0 %v548
    %667 = vmatprep.subr.mxu0 %v565
    %668 = vmatpush1.msra.mxu0 %v564
    %669 = vmatprep.subr.mxu0 %v581
    %670 = vmatpush1.msra.mxu0 %v580
    %671 = vmatprep.mubr.f32.mxu0 %v604
    %672 = vmatmul.mubr.f32.gmra.mrb[0].mxu0 %v603
    %v673 = vpop.f32.mrb[0].mxu0
    %v674 = vadd.f32 0.0, %v673
    %v675 = vpop.f32.mrb[0].mxu0
    %v676 = vadd.f32 0.0, %v675
    %677 = vdwg.mxu0
    %678 = vmatprep.subr.mxu0 %v87
    %679 = vmatpush1.msra.mxu0 %v86
    %680 = vmatprep.subr.mxu0 %v103
    %681 = vmatpush1.msra.mxu0 %v102
    %682 = vmatprep.subr.mxu0 %v119
    %683 = vmatpush1.msra.mxu0 %v118
    %684 = vmatprep.subr.mxu0 %v135
    %685 = vmatpush1.msra.mxu0 %v134
    %686 = vmatprep.subr.mxu0 %v151
    %687 = vmatpush1.msra.mxu0 %v150
    %688 = vmatprep.subr.mxu0 %v167
    %689 = vmatpush1.msra.mxu0 %v166
    %690 = vmatprep.subr.mxu0 %v183
    %691 = vmatpush1.msra.mxu0 %v182
    %692 = vmatprep.subr.mxu0 %v199
    %693 = vmatpush1.msra.mxu0 %v198
    %694 = vmatprep.subr.mxu0 %v215
    %695 = vmatpush1.msra.mxu0 %v214
    %696 = vmatprep.subr.mxu0 %v231
    %697 = vmatpush1.msra.mxu0 %v230
    %698 = vmatprep.subr.mxu0 %v247
    %699 = vmatpush1.msra.mxu0 %v246
    %700 = vmatprep.subr.mxu0 %v263
    %701 = vmatpush1.msra.mxu0 %v262
    %702 = vmatprep.subr.mxu0 %v279
    %703 = vmatpush1.msra.mxu0 %v278
    %704 = vmatprep.subr.mxu0 %v295
    %705 = vmatpush1.msra.mxu0 %v294
    %706 = vmatprep.subr.mxu0 %v311
    %707 = vmatpush1.msra.mxu0 %v310
    %708 = vmatprep.subr.mxu0 %v327
    %709 = vmatpush1.msra.mxu0 %v326
    %710 = vmatprep.subr.mxu0 %v343
    %711 = vmatpush1.msra.mxu0 %v342
    %712 = vmatprep.subr.mxu0 %v359
    %713 = vmatpush1.msra.mxu0 %v358
    %714 = vmatprep.subr.mxu0 %v375
    %715 = vmatpush1.msra.mxu0 %v374
    %716 = vmatprep.subr.mxu0 %v391
    %717 = vmatpush1.msra.mxu0 %v390
    %718 = vmatprep.subr.mxu0 %v407
    %719 = vmatpush1.msra.mxu0 %v406
    %720 = vmatprep.subr.mxu0 %v423
    %721 = vmatpush1.msra.mxu0 %v422
    %722 = vmatprep.subr.mxu0 %v439
    %723 = vmatpush1.msra.mxu0 %v438
    %724 = vmatprep.subr.mxu0 %v455
    %725 = vmatpush1.msra.mxu0 %v454
    %726 = vmatprep.subr.mxu0 %v471
    %727 = vmatpush1.msra.mxu0 %v470
    %728 = vmatprep.subr.mxu0 %v487
    %729 = vmatpush1.msra.mxu0 %v486
    %730 = vmatprep.subr.mxu0 %v503
    %731 = vmatpush1.msra.mxu0 %v502
    %732 = vmatprep.subr.mxu0 %v519
    %733 = vmatpush1.msra.mxu0 %v518
    %734 = vmatprep.subr.mxu0 %v535
    %735 = vmatpush1.msra.mxu0 %v534
    %736 = vmatprep.subr.mxu0 %v551
    %737 = vmatpush1.msra.mxu0 %v550
    %738 = vmatprep.subr.mxu0 %v567
    %739 = vmatpush1.msra.mxu0 %v566
    %740 = vmatprep.subr.mxu0 %v583
    %741 = vmatpush1.msra.mxu0 %v582
    %742 = vmatprep.mubr.f32.mxu0 %v604
    %743 = vmatmul.mubr.f32.gmra.mrb[0].mxu0 %v603
    %v744 = vpop.f32.mrb[0].mxu0
    %v745 = vadd.f32 0.0, %v744
    %v746 = vpop.f32.mrb[0].mxu0
    %v747 = vadd.f32 0.0, %v746
    %748 = vdwg.mxu0
    %749 = vmatprep.subr.mxu0 %v89
    %750 = vmatpush1.msra.mxu0 %v88
    %751 = vmatprep.subr.mxu0 %v105
    %752 = vmatpush1.msra.mxu0 %v104
    %753 = vmatprep.subr.mxu0 %v121
    %754 = vmatpush1.msra.mxu0 %v120
    %755 = vmatprep.subr.mxu0 %v137
    %756 = vmatpush1.msra.mxu0 %v136
    %757 = vmatprep.subr.mxu0 %v153
    %758 = vmatpush1.msra.mxu0 %v152
    %759 = vmatprep.subr.mxu0 %v169
    %760 = vmatpush1.msra.mxu0 %v168
    %761 = vmatprep.subr.mxu0 %v185
    %762 = vmatpush1.msra.mxu0 %v184
    %763 = vmatprep.subr.mxu0 %v201
    %764 = vmatpush1.msra.mxu0 %v200
    %765 = vmatprep.subr.mxu0 %v217
    %766 = vmatpush1.msra.mxu0 %v216
    %767 = vmatprep.subr.mxu0 %v233
    %768 = vmatpush1.msra.mxu0 %v232
    %769 = vmatprep.subr.mxu0 %v249
    %770 = vmatpush1.msra.mxu0 %v248
    %771 = vmatprep.subr.mxu0 %v265
    %772 = vmatpush1.msra.mxu0 %v264
    %773 = vmatprep.subr.mxu0 %v281
    %774 = vmatpush1.msra.mxu0 %v280
    %775 = vmatprep.subr.mxu0 %v297
    %776 = vmatpush1.msra.mxu0 %v296
    %777 = vmatprep.subr.mxu0 %v313
    %778 = vmatpush1.msra.mxu0 %v312
    %779 = vmatprep.subr.mxu0 %v329
    %780 = vmatpush1.msra.mxu0 %v328
    %781 = vmatprep.subr.mxu0 %v345
    %782 = vmatpush1.msra.mxu0 %v344
    %783 = vmatprep.subr.mxu0 %v361
    %784 = vmatpush1.msra.mxu0 %v360
    %785 = vmatprep.subr.mxu0 %v377
    %786 = vmatpush1.msra.mxu0 %v376
    %787 = vmatprep.subr.mxu0 %v393
    %788 = vmatpush1.msra.mxu0 %v392
    %789 = vmatprep.subr.mxu0 %v409
    %790 = vmatpush1.msra.mxu0 %v408
    %791 = vmatprep.subr.mxu0 %v425
    %792 = vmatpush1.msra.mxu0 %v424
    %793 = vmatprep.subr.mxu0 %v441
    %794 = vmatpush1.msra.mxu0 %v440
    %795 = vmatprep.subr.mxu0 %v457
    %796 = vmatpush1.msra.mxu0 %v456
    %797 = vmatprep.subr.mxu0 %v473
    %798 = vmatpush1.msra.mxu0 %v472
    %799 = vmatprep.subr.mxu0 %v489
    %800 = vmatpush1.msra.mxu0 %v488
    %801 = vmatprep.subr.mxu0 %v505
    %802 = vmatpush1.msra.mxu0 %v504
    %803 = vmatprep.subr.mxu0 %v521
    %804 = vmatpush1.msra.mxu0 %v520
    %805 = vmatprep.subr.mxu0 %v537
    %806 = vmatpush1.msra.mxu0 %v536
    %807 = vmatprep.subr.mxu0 %v553
    %808 = vmatpush1.msra.mxu0 %v552
    %809 = vmatprep.subr.mxu0 %v569
    %810 = vmatpush1.msra.mxu0 %v568
    %811 = vmatprep.subr.mxu0 %v585
    %812 = vmatpush1.msra.mxu0 %v584
    %813 = vmatprep.mubr.f32.mxu0 %v604
    %814 = vmatmul.mubr.f32.gmra.mrb[0].mxu0 %v603
    %v815 = vpop.f32.mrb[0].mxu0
    %v816 = vadd.f32 0.0, %v815
    %v817 = vpop.f32.mrb[0].mxu0
    %v818 = vadd.f32 0.0, %v817
    %819 = vdwg.mxu0
    %820 = vmatprep.subr.mxu0 %v91
    %821 = vmatpush1.msra.mxu0 %v90
    %822 = vmatprep.subr.mxu0 %v107
    %823 = vmatpush1.msra.mxu0 %v106
    %824 = vmatprep.subr.mxu0 %v123
    %825 = vmatpush1.msra.mxu0 %v122
    %826 = vmatprep.subr.mxu0 %v139
    %827 = vmatpush1.msra.mxu0 %v138
    %828 = vmatprep.subr.mxu0 %v155
    %829 = vmatpush1.msra.mxu0 %v154
    %830 = vmatprep.subr.mxu0 %v171
    %831 = vmatpush1.msra.mxu0 %v170
    %832 = vmatprep.subr.mxu0 %v187
    %833 = vmatpush1.msra.mxu0 %v186
    %834 = vmatprep.subr.mxu0 %v203
    %835 = vmatpush1.msra.mxu0 %v202
    %836 = vmatprep.subr.mxu0 %v219
    %837 = vmatpush1.msra.mxu0 %v218
    %838 = vmatprep.subr.mxu0 %v235
    %839 = vmatpush1.msra.mxu0 %v234
    %840 = vmatprep.subr.mxu0 %v251
    %841 = vmatpush1.msra.mxu0 %v250
    %842 = vmatprep.subr.mxu0 %v267
    %843 = vmatpush1.msra.mxu0 %v266
    %844 = vmatprep.subr.mxu0 %v283
    %845 = vmatpush1.msra.mxu0 %v282
    %846 = vmatprep.subr.mxu0 %v299
    %847 = vmatpush1.msra.mxu0 %v298
    %848 = vmatprep.subr.mxu0 %v315
    %849 = vmatpush1.msra.mxu0 %v314
    %850 = vmatprep.subr.mxu0 %v331
    %851 = vmatpush1.msra.mxu0 %v330
    %852 = vmatprep.subr.mxu0 %v347
    %853 = vmatpush1.msra.mxu0 %v346
    %854 = vmatprep.subr.mxu0 %v363
    %855 = vmatpush1.msra.mxu0 %v362
    %856 = vmatprep.subr.mxu0 %v379
    %857 = vmatpush1.msra.mxu0 %v378
    %858 = vmatprep.subr.mxu0 %v395
    %859 = vmatpush1.msra.mxu0 %v394
    %860 = vmatprep.subr.mxu0 %v411
    %861 = vmatpush1.msra.mxu0 %v410
    %862 = vmatprep.subr.mxu0 %v427
    %863 = vmatpush1.msra.mxu0 %v426
    %864 = vmatprep.subr.mxu0 %v443
    %865 = vmatpush1.msra.mxu0 %v442
    %866 = vmatprep.subr.mxu0 %v459
    %867 = vmatpush1.msra.mxu0 %v458
    %868 = vmatprep.subr.mxu0 %v475
    %869 = vmatpush1.msra.mxu0 %v474
    %870 = vmatprep.subr.mxu0 %v491
    %871 = vmatpush1.msra.mxu0 %v490
    %872 = vmatprep.subr.mxu0 %v507
    %873 = vmatpush1.msra.mxu0 %v506
    %874 = vmatprep.subr.mxu0 %v523
    %875 = vmatpush1.msra.mxu0 %v522
    %876 = vmatprep.subr.mxu0 %v539
    %877 = vmatpush1.msra.mxu0 %v538
    %878 = vmatprep.subr.mxu0 %v555
    %879 = vmatpush1.msra.mxu0 %v554
    %880 = vmatprep.subr.mxu0 %v571
    %881 = vmatpush1.msra.mxu0 %v570
    %882 = vmatprep.subr.mxu0 %v587
    %883 = vmatpush1.msra.mxu0 %v586
    %884 = vmatprep.mubr.f32.mxu0 %v604
    %885 = vmatmul.mubr.f32.gmra.mrb[0].mxu0 %v603
    %v886 = vpop.f32.mrb[0].mxu0
    %v887 = vadd.f32 0.0, %v886
    %v888 = vpop.f32.mrb[0].mxu0
    %v889 = vadd.f32 0.0, %v888
    %890 = vdwg.mxu0
    %891 = vmatprep.subr.mxu0 %v93
    %892 = vmatpush1.msra.mxu0 %v92
    %893 = vmatprep.subr.mxu0 %v109
    %894 = vmatpush1.msra.mxu0 %v108
    %895 = vmatprep.subr.mxu0 %v125
    %896 = vmatpush1.msra.mxu0 %v124
    %897 = vmatprep.subr.mxu0 %v141
    %898 = vmatpush1.msra.mxu0 %v140
    %899 = vmatprep.subr.mxu0 %v157
    %900 = vmatpush1.msra.mxu0 %v156
    %901 = vmatprep.subr.mxu0 %v173
    %902 = vmatpush1.msra.mxu0 %v172
    %903 = vmatprep.subr.mxu0 %v189
    %904 = vmatpush1.msra.mxu0 %v188
    %905 = vmatprep.subr.mxu0 %v205
    %906 = vmatpush1.msra.mxu0 %v204
    %907 = vmatprep.subr.mxu0 %v221
    %908 = vmatpush1.msra.mxu0 %v220
    %909 = vmatprep.subr.mxu0 %v237
    %910 = vmatpush1.msra.mxu0 %v236
    %911 = vmatprep.subr.mxu0 %v253
    %912 = vmatpush1.msra.mxu0 %v252
    %913 = vmatprep.subr.mxu0 %v269
    %914 = vmatpush1.msra.mxu0 %v268
    %915 = vmatprep.subr.mxu0 %v285
    %916 = vmatpush1.msra.mxu0 %v284
    %917 = vmatprep.subr.mxu0 %v301
    %918 = vmatpush1.msra.mxu0 %v300
    %919 = vmatprep.subr.mxu0 %v317
    %920 = vmatpush1.msra.mxu0 %v316
    %921 = vmatprep.subr.mxu0 %v333
    %922 = vmatpush1.msra.mxu0 %v332
    %923 = vmatprep.subr.mxu0 %v349
    %924 = vmatpush1.msra.mxu0 %v348
    %925 = vmatprep.subr.mxu0 %v365
    %926 = vmatpush1.msra.mxu0 %v364
    %927 = vmatprep.subr.mxu0 %v381
    %928 = vmatpush1.msra.mxu0 %v380
    %929 = vmatprep.subr.mxu0 %v397
    %930 = vmatpush1.msra.mxu0 %v396
    %931 = vmatprep.subr.mxu0 %v413
    %932 = vmatpush1.msra.mxu0 %v412
    %933 = vmatprep.subr.mxu0 %v429
    %934 = vmatpush1.msra.mxu0 %v428
    %935 = vmatprep.subr.mxu0 %v445
    %936 = vmatpush1.msra.mxu0 %v444
    %937 = vmatprep.subr.mxu0 %v461
    %938 = vmatpush1.msra.mxu0 %v460
    %939 = vmatprep.subr.mxu0 %v477
    %940 = vmatpush1.msra.mxu0 %v476
    %941 = vmatprep.subr.mxu0 %v493
    %942 = vmatpush1.msra.mxu0 %v492
    %943 = vmatprep.subr.mxu0 %v509
    %944 = vmatpush1.msra.mxu0 %v508
    %945 = vmatprep.subr.mxu0 %v525
    %946 = vmatpush1.msra.mxu0 %v524
    %947 = vmatprep.subr.mxu0 %v541
    %948 = vmatpush1.msra.mxu0 %v540
    %949 = vmatprep.subr.mxu0 %v557
    %950 = vmatpush1.msra.mxu0 %v556
    %951 = vmatprep.subr.mxu0 %v573
    %952 = vmatpush1.msra.mxu0 %v572
    %953 = vmatprep.subr.mxu0 %v589
    %954 = vmatpush1.msra.mxu0 %v588
    %955 = vmatprep.mubr.f32.mxu0 %v604
    %956 = vmatmul.mubr.f32.gmra.mrb[0].mxu0 %v603
    %v957 = vpop.f32.mrb[0].mxu0
    %v958 = vadd.f32 0.0, %v957
    %v959 = vpop.f32.mrb[0].mxu0
    %v960 = vadd.f32 0.0, %v959
    %961 = vdwg.mxu0
    %962 = vmatprep.subr.mxu0 %v95
    %963 = vmatpush1.msra.mxu0 %v94
    %964 = vmatprep.subr.mxu0 %v111
    %965 = vmatpush1.msra.mxu0 %v110
    %966 = vmatprep.subr.mxu0 %v127
    %967 = vmatpush1.msra.mxu0 %v126
    %968 = vmatprep.subr.mxu0 %v143
    %969 = vmatpush1.msra.mxu0 %v142
    %970 = vmatprep.subr.mxu0 %v159
    %971 = vmatpush1.msra.mxu0 %v158
    %972 = vmatprep.subr.mxu0 %v175
    %973 = vmatpush1.msra.mxu0 %v174
    %974 = vmatprep.subr.mxu0 %v191
    %975 = vmatpush1.msra.mxu0 %v190
    %976 = vmatprep.subr.mxu0 %v207
    %977 = vmatpush1.msra.mxu0 %v206
    %978 = vmatprep.subr.mxu0 %v223
    %979 = vmatpush1.msra.mxu0 %v222
    %980 = vmatprep.subr.mxu0 %v239
    %981 = vmatpush1.msra.mxu0 %v238
    %982 = vmatprep.subr.mxu0 %v255
    %983 = vmatpush1.msra.mxu0 %v254
    %984 = vmatprep.subr.mxu0 %v271
    %985 = vmatpush1.msra.mxu0 %v270
    %986 = vmatprep.subr.mxu0 %v287
    %987 = vmatpush1.msra.mxu0 %v286
    %988 = vmatprep.subr.mxu0 %v303
    %989 = vmatpush1.msra.mxu0 %v302
    %990 = vmatprep.subr.mxu0 %v319
    %991 = vmatpush1.msra.mxu0 %v318
    %992 = vmatprep.subr.mxu0 %v335
    %993 = vmatpush1.msra.mxu0 %v334
    %994 = vmatprep.subr.mxu0 %v351
    %995 = vmatpush1.msra.mxu0 %v350
    %996 = vmatprep.subr.mxu0 %v367
    %997 = vmatpush1.msra.mxu0 %v366
    %998 = vmatprep.subr.mxu0 %v383
    %999 = vmatpush1.msra.mxu0 %v382
    %1000 = vmatprep.subr.mxu0 %v399
    %1001 = vmatpush1.msra.mxu0 %v398
    %1002 = vmatprep.subr.mxu0 %v415
    %1003 = vmatpush1.msra.mxu0 %v414
    %1004 = vmatprep.subr.mxu0 %v431
    %1005 = vmatpush1.msra.mxu0 %v430
    %1006 = vmatprep.subr.mxu0 %v447
    %1007 = vmatpush1.msra.mxu0 %v446
    %1008 = vmatprep.subr.mxu0 %v463
    %1009 = vmatpush1.msra.mxu0 %v462
    %1010 = vmatprep.subr.mxu0 %v479
    %1011 = vmatpush1.msra.mxu0 %v478
    %1012 = vmatprep.subr.mxu0 %v495
    %1013 = vmatpush1.msra.mxu0 %v494
    %1014 = vmatprep.subr.mxu0 %v511
    %1015 = vmatpush1.msra.mxu0 %v510
    %1016 = vmatprep.subr.mxu0 %v527
    %1017 = vmatpush1.msra.mxu0 %v526
    %1018 = vmatprep.subr.mxu0 %v543
    %1019 = vmatpush1.msra.mxu0 %v542
    %1020 = vmatprep.subr.mxu0 %v559
    %1021 = vmatpush1.msra.mxu0 %v558
    %1022 = vmatprep.subr.mxu0 %v575
    %1023 = vmatpush1.msra.mxu0 %v574
    %1024 = vmatprep.subr.mxu0 %v591
    %1025 = vmatpush1.msra.mxu0 %v590
    %1026 = vmatprep.mubr.f32.mxu0 %v604
    %1027 = vmatmul.mubr.f32.gmra.mrb[0].mxu0 %v603
    %v1028 = vpop.f32.mrb[0].mxu0
    %v1029 = vadd.f32 0.0, %v1028
    %v1030 = vpop.f32.mrb[0].mxu0
    %v1031 = vadd.f32 0.0, %v1030
    %1032 = vdwg.mxu0
    %1033 = vmatprep.subr.mxu0 %v97
    %1034 = vmatpush1.msra.mxu0 %v96
    %1035 = vmatprep.subr.mxu0 %v113
    %1036 = vmatpush1.msra.mxu0 %v112
    %1037 = vmatprep.subr.mxu0 %v129
    %1038 = vmatpush1.msra.mxu0 %v128
    %1039 = vmatprep.subr.mxu0 %v145
    %1040 = vmatpush1.msra.mxu0 %v144
    %1041 = vmatprep.subr.mxu0 %v161
    %1042 = vmatpush1.msra.mxu0 %v160
    %1043 = vmatprep.subr.mxu0 %v177
    %1044 = vmatpush1.msra.mxu0 %v176
    %1045 = vmatprep.subr.mxu0 %v193
    %1046 = vmatpush1.msra.mxu0 %v192
    %1047 = vmatprep.subr.mxu0 %v209
    %1048 = vmatpush1.msra.mxu0 %v208
    %1049 = vmatprep.subr.mxu0 %v225
    %1050 = vmatpush1.msra.mxu0 %v224
    %1051 = vmatprep.subr.mxu0 %v241
    %1052 = vmatpush1.msra.mxu0 %v240
    %1053 = vmatprep.subr.mxu0 %v257
    %1054 = vmatpush1.msra.mxu0 %v256
    %1055 = vmatprep.subr.mxu0 %v273
    %1056 = vmatpush1.msra.mxu0 %v272
    %1057 = vmatprep.subr.mxu0 %v289
    %1058 = vmatpush1.msra.mxu0 %v288
    %1059 = vmatprep.subr.mxu0 %v305
    %1060 = vmatpush1.msra.mxu0 %v304
    %1061 = vmatprep.subr.mxu0 %v321
    %1062 = vmatpush1.msra.mxu0 %v320
    %1063 = vmatprep.subr.mxu0 %v337
    %1064 = vmatpush1.msra.mxu0 %v336
    %1065 = vmatprep.subr.mxu0 %v353
    %1066 = vmatpush1.msra.mxu0 %v352
    %1067 = vmatprep.subr.mxu0 %v369
    %1068 = vmatpush1.msra.mxu0 %v368
    %1069 = vmatprep.subr.mxu0 %v385
    %1070 = vmatpush1.msra.mxu0 %v384
    %1071 = vmatprep.subr.mxu0 %v401
    %1072 = vmatpush1.msra.mxu0 %v400
    %1073 = vmatprep.subr.mxu0 %v417
    %1074 = vmatpush1.msra.mxu0 %v416
    %1075 = vmatprep.subr.mxu0 %v433
    %1076 = vmatpush1.msra.mxu0 %v432
    %1077 = vmatprep.subr.mxu0 %v449
    %1078 = vmatpush1.msra.mxu0 %v448
    %1079 = vmatprep.subr.mxu0 %v465
    %1080 = vmatpush1.msra.mxu0 %v464
    %1081 = vmatprep.subr.mxu0 %v481
    %1082 = vmatpush1.msra.mxu0 %v480
    %1083 = vmatprep.subr.mxu0 %v497
    %1084 = vmatpush1.msra.mxu0 %v496
    %1085 = vmatprep.subr.mxu0 %v513
    %1086 = vmatpush1.msra.mxu0 %v512
    %1087 = vmatprep.subr.mxu0 %v529
    %1088 = vmatpush1.msra.mxu0 %v528
    %1089 = vmatprep.subr.mxu0 %v545
    %1090 = vmatpush1.msra.mxu0 %v544
    %1091 = vmatprep.subr.mxu0 %v561
    %1092 = vmatpush1.msra.mxu0 %v560
    %1093 = vmatprep.subr.mxu0 %v577
    %1094 = vmatpush1.msra.mxu0 %v576
    %1095 = vmatprep.subr.mxu0 %v593
    %1096 = vmatpush1.msra.mxu0 %v592
    %1097 = vmatprep.mubr.f32.mxu0 %v604
    %1098 = vmatmul.mubr.f32.gmra.mrb[0].mxu0 %v603
    %v1099 = vpop.f32.mrb[0].mxu0
    %v1100 = vadd.f32 0.0, %v1099
    %v1101 = vpop.f32.mrb[0].mxu0
    %v1102 = vadd.f32 0.0, %v1101
    %1103 = vdwg.mxu0
    %1104 = vmatprep.subr.mxu0 %v99
    %1105 = vmatpush1.msra.mxu0 %v98
    %1106 = vmatprep.subr.mxu0 %v115
    %1107 = vmatpush1.msra.mxu0 %v114
    %1108 = vmatprep.subr.mxu0 %v131
    %1109 = vmatpush1.msra.mxu0 %v130
    %1110 = vmatprep.subr.mxu0 %v147
    %1111 = vmatpush1.msra.mxu0 %v146
    %1112 = vmatprep.subr.mxu0 %v163
    %1113 = vmatpush1.msra.mxu0 %v162
    %1114 = vmatprep.subr.mxu0 %v179
    %1115 = vmatpush1.msra.mxu0 %v178
    %1116 = vmatprep.subr.mxu0 %v195
    %1117 = vmatpush1.msra.mxu0 %v194
    %1118 = vmatprep.subr.mxu0 %v211
    %1119 = vmatpush1.msra.mxu0 %v210
    %1120 = vmatprep.subr.mxu0 %v227
    %1121 = vmatpush1.msra.mxu0 %v226
    %1122 = vmatprep.subr.mxu0 %v243
    %1123 = vmatpush1.msra.mxu0 %v242
    %1124 = vmatprep.subr.mxu0 %v259
    %1125 = vmatpush1.msra.mxu0 %v258
    %1126 = vmatprep.subr.mxu0 %v275
    %1127 = vmatpush1.msra.mxu0 %v274
    %1128 = vmatprep.subr.mxu0 %v291
    %1129 = vmatpush1.msra.mxu0 %v290
    %1130 = vmatprep.subr.mxu0 %v307
    %1131 = vmatpush1.msra.mxu0 %v306
    %1132 = vmatprep.subr.mxu0 %v323
    %1133 = vmatpush1.msra.mxu0 %v322
    %1134 = vmatprep.subr.mxu0 %v339
    %1135 = vmatpush1.msra.mxu0 %v338
    %1136 = vmatprep.subr.mxu0 %v355
    %1137 = vmatpush1.msra.mxu0 %v354
    %1138 = vmatprep.subr.mxu0 %v371
    %1139 = vmatpush1.msra.mxu0 %v370
    %1140 = vmatprep.subr.mxu0 %v387
    %1141 = vmatpush1.msra.mxu0 %v386
    %1142 = vmatprep.subr.mxu0 %v403
    %1143 = vmatpush1.msra.mxu0 %v402
    %1144 = vmatprep.subr.mxu0 %v419
    %1145 = vmatpush1.msra.mxu0 %v418
    %1146 = vmatprep.subr.mxu0 %v435
    %1147 = vmatpush1.msra.mxu0 %v434
    %1148 = vmatprep.subr.mxu0 %v451
    %1149 = vmatpush1.msra.mxu0 %v450
    %1150 = vmatprep.subr.mxu0 %v467
    %1151 = vmatpush1.msra.mxu0 %v466
    %1152 = vmatprep.subr.mxu0 %v483
    %1153 = vmatpush1.msra.mxu0 %v482
    %1154 = vmatprep.subr.mxu0 %v499
    %1155 = vmatpush1.msra.mxu0 %v498
    %1156 = vmatprep.subr.mxu0 %v515
    %1157 = vmatpush1.msra.mxu0 %v514
    %1158 = vmatprep.subr.mxu0 %v531
    %1159 = vmatpush1.msra.mxu0 %v530
    %1160 = vmatprep.subr.mxu0 %v547
    %1161 = vmatpush1.msra.mxu0 %v546
    %1162 = vmatprep.subr.mxu0 %v563
    %1163 = vmatpush1.msra.mxu0 %v562
    %1164 = vmatprep.subr.mxu0 %v579
    %1165 = vmatpush1.msra.mxu0 %v578
    %1166 = vmatprep.subr.mxu0 %v595
    %1167 = vmatpush1.msra.mxu0 %v594
    %1168 = vmatprep.mubr.f32.mxu0 %v604
    %1169 = vmatmul.mubr.f32.gmra.mrb[0].mxu0 %v603
    %v1170 = vpop.f32.mrb[0].mxu0
    %v1171 = vadd.f32 0.0, %v1170
    %v1172 = vpop.f32.mrb[0].mxu0
    %v1173 = vadd.f32 0.0, %v1172
    %1174 = vdwg.mxu0
    %v1175 = vmax.f32 %v674, %v816
    %v1176 = vmax.f32 %v676, %v818
    %v1177 = vmax.f32 %v745, %v887
    %v1178 = vmax.f32 %v747, %v889
    %v1179 = vmax.f32 %v958, %v1100
    %v1180 = vmax.f32 %v960, %v1102
    %v1181 = vmax.f32 %v1029, %v1171
    %v1182 = vmax.f32 %v1031, %v1173
    %v1183 = vmax.f32 %v1175, %v1179
    %v1184 = vmax.f32 %v1176, %v1180
    %v1185 = vmax.f32 %v1177, %v1181
    %v1186 = vmax.f32 %v1178, %v1182
    %v1187 = vld [vmem:[#allocation7] sm:$0xf]
    %v1189 = vlaneseq
    %v1190 = vshrl.u32 %v1189, 7
    %v1191 = vsub.s32 0, %v1190
    %v1192 = vrot.slane %v1187, %v1191
    %v1193 = vlaneseq
    %v1194 = vshrl.u32 %v1193, 7
    %v1195 = vsub.s32 1, %v1194
    %v1196 = vrot.slane %v1187, %v1195
    %v1197 = vlaneseq
    %v1198 = vshrl.u32 %v1197, 7
    %v1199 = vsub.s32 2, %v1198
    %v1200 = vrot.slane %v1187, %v1199
    %v1201 = vlaneseq
    %v1202 = vshrl.u32 %v1201, 7
    %v1203 = vsub.s32 3, %v1202
    %v1204 = vrot.slane %v1187, %v1203
    %v1209 = vadd.f32 %v1183, %v1192
    %v1210 = vadd.f32 %v1184, %v1196
    %v1211 = vadd.f32 %v1185, %v1200
    %v1212 = vadd.f32 %v1186, %v1204
    %v1213 = vmax.f32 %v1209, 0.0
    %v1214 = vmax.f32 %v1210, 0.0
    %v1215 = vmax.f32 %v1211, 0.0
    %v1216 = vmax.f32 %v1212, 0.0
    %v1217 = vld [vmem:[#allocation8] sm:$0xff]
    %v1218 = vld [vmem:[#allocation8 + $0x8] sm:$0xff]
    %v1219 = vld [vmem:[#allocation8 + $0x10] sm:$0xff]
    %v1220 = vld [vmem:[#allocation8 + $0x18] sm:$0xff]
    %v1221 = vld [vmem:[#allocation8 + $0x20] sm:$0xff]
    %v1222 = vld [vmem:[#allocation8 + $0x28] sm:$0xff]
    %v1223 = vld [vmem:[#allocation8 + $0x30] sm:$0xff]
    %v1224 = vld [vmem:[#allocation8 + $0x38] sm:$0xff]
    %v1225 = vld [vmem:[#allocation8 + $0x40] sm:$0xff]
    %v1226 = vld [vmem:[#allocation8 + $0x48] sm:$0xff]
    %v1227 = vld [vmem:[#allocation8 + $0x50] sm:$0xff]
    %v1228 = vld [vmem:[#allocation8 + $0x58] sm:$0xff]
    %v1229 = vld [vmem:[#allocation8 + $0x60] sm:$0xff]
    %v1230 = vld [vmem:[#allocation8 + $0x68] sm:$0xff]
    %v1231 = vld [vmem:[#allocation8 + $0x70] sm:$0xff]
    %v1232 = vld [vmem:[#allocation8 + $0x78] sm:$0xff]
    %v1233 = vld [vmem:[#allocation8 + $0x80] sm:$0xff]
    %v1234 = vld [vmem:[#allocation8 + $0x88] sm:$0xff]
    %v1235 = vld [vmem:[#allocation8 + $0x90] sm:$0xff]
    %v1236 = vld [vmem:[#allocation8 + $0x98] sm:$0xff]
    %v1237 = vld [vmem:[#allocation8 + $0xa0] sm:$0xff]
    %v1238 = vld [vmem:[#allocation8 + $0xa8] sm:$0xff]
    %v1239 = vld [vmem:[#allocation8 + $0xb0] sm:$0xff]
    %v1240 = vld [vmem:[#allocation8 + $0xb8] sm:$0xff]
    %v1241 = vld [vmem:[#allocation8 + $0xc0] sm:$0xff]
    %v1242 = vld [vmem:[#allocation8 + $0xc8] sm:$0xff]
    %v1243 = vld [vmem:[#allocation8 + $0xd0] sm:$0xff]
    %v1244 = vld [vmem:[#allocation8 + $0xd8] sm:$0xff]
    %v1245 = vld [vmem:[#allocation8 + $0xe0] sm:$0xff]
    %v1246 = vld [vmem:[#allocation8 + $0xe8] sm:$0xff]
    %v1247 = vld [vmem:[#allocation8 + $0xf0] sm:$0xff]
    %v1248 = vld [vmem:[#allocation8 + $0xf8] sm:$0xff]
    %v1249 = vld [vmem:[#allocation8 + $0x100] sm:$0xff]
    %v1250 = vld [vmem:[#allocation8 + $0x108] sm:$0xff]
    %v1251 = vld [vmem:[#allocation8 + $0x110] sm:$0xff]
    %v1252 = vld [vmem:[#allocation8 + $0x118] sm:$0xff]
    %v1253 = vld [vmem:[#allocation8 + $0x120] sm:$0xff]
    %v1254 = vld [vmem:[#allocation8 + $0x128] sm:$0xff]
    %v1255 = vld [vmem:[#allocation8 + $0x130] sm:$0xff]
    %v1256 = vld [vmem:[#allocation8 + $0x138] sm:$0xff]
    %v1257 = vld [vmem:[#allocation8 + $0x140] sm:$0xff]
    %v1258 = vld [vmem:[#allocation8 + $0x148] sm:$0xff]
    %v1259 = vld [vmem:[#allocation8 + $0x150] sm:$0xff]
    %v1260 = vld [vmem:[#allocation8 + $0x158] sm:$0xff]
    %v1261 = vld [vmem:[#allocation8 + $0x160] sm:$0xff]
    %v1262 = vld [vmem:[#allocation8 + $0x168] sm:$0xff]
    %v1263 = vld [vmem:[#allocation8 + $0x170] sm:$0xff]
    %v1264 = vld [vmem:[#allocation8 + $0x178] sm:$0xff]
    %v1265 = vld [vmem:[#allocation8 + $0x180] sm:$0xff]
    %v1266 = vld [vmem:[#allocation8 + $0x188] sm:$0xff]
    %v1267 = vld [vmem:[#allocation8 + $0x190] sm:$0xff]
    %v1268 = vld [vmem:[#allocation8 + $0x198] sm:$0xff]
    %v1269 = vld [vmem:[#allocation8 + $0x1a0] sm:$0xff]
    %v1270 = vld [vmem:[#allocation8 + $0x1a8] sm:$0xff]
    %v1271 = vld [vmem:[#allocation8 + $0x1b0] sm:$0xff]
    %v1272 = vld [vmem:[#allocation8 + $0x1b8] sm:$0xff]
    %v1273 = vld [vmem:[#allocation8 + $0x1c0] sm:$0xff]
    %v1274 = vld [vmem:[#allocation8 + $0x1c8] sm:$0xff]
    %v1275 = vld [vmem:[#allocation8 + $0x1d0] sm:$0xff]
    %v1276 = vld [vmem:[#allocation8 + $0x1d8] sm:$0xff]
    %v1277 = vld [vmem:[#allocation8 + $0x1e0] sm:$0xff]
    %v1278 = vld [vmem:[#allocation8 + $0x1e8] sm:$0xff]
    %v1279 = vld [vmem:[#allocation8 + $0x1f0] sm:$0xff]
    %v1280 = vld [vmem:[#allocation8 + $0x1f8] sm:$0xff]
    %v1281 = vld [vmem:[#allocation8 + $0x200] sm:$0xff]
    %v1282 = vld [vmem:[#allocation8 + $0x208] sm:$0xff]
    %v1283 = vld [vmem:[#allocation8 + $0x210] sm:$0xff]
    %v1284 = vld [vmem:[#allocation8 + $0x218] sm:$0xff]
    %v1285 = vld [vmem:[#allocation8 + $0x220] sm:$0xff]
    %v1286 = vld [vmem:[#allocation8 + $0x228] sm:$0xff]
    %v1287 = vld [vmem:[#allocation8 + $0x230] sm:$0xff]
    %v1288 = vld [vmem:[#allocation8 + $0x238] sm:$0xff]
    %v1289 = vld [vmem:[#allocation8 + $0x240] sm:$0xff]
    %v1290 = vld [vmem:[#allocation8 + $0x248] sm:$0xff]
    %v1291 = vld [vmem:[#allocation8 + $0x250] sm:$0xff]
    %v1292 = vld [vmem:[#allocation8 + $0x258] sm:$0xff]
    %v1293 = vld [vmem:[#allocation8 + $0x260] sm:$0xff]
    %v1294 = vld [vmem:[#allocation8 + $0x268] sm:$0xff]
    %v1295 = vld [vmem:[#allocation8 + $0x270] sm:$0xff]
    %v1296 = vld [vmem:[#allocation8 + $0x278] sm:$0xff]
    %v1297 = vld [vmem:[#allocation8 + $0x280] sm:$0xff]
    %v1298 = vld [vmem:[#allocation8 + $0x288] sm:$0xff]
    %v1299 = vld [vmem:[#allocation8 + $0x290] sm:$0xff]
    %v1300 = vld [vmem:[#allocation8 + $0x298] sm:$0xff]
    %v1301 = vld [vmem:[#allocation8 + $0x2a0] sm:$0xff]
    %v1302 = vld [vmem:[#allocation8 + $0x2a8] sm:$0xff]
    %v1303 = vld [vmem:[#allocation8 + $0x2b0] sm:$0xff]
    %v1304 = vld [vmem:[#allocation8 + $0x2b8] sm:$0xff]
    %v1305 = vld [vmem:[#allocation8 + $0x2c0] sm:$0xff]
    %v1306 = vld [vmem:[#allocation8 + $0x2c8] sm:$0xff]
    %v1307 = vld [vmem:[#allocation8 + $0x2d0] sm:$0xff]
    %v1308 = vld [vmem:[#allocation8 + $0x2d8] sm:$0xff]
    %v1309 = vld [vmem:[#allocation8 + $0x2e0] sm:$0xff]
    %v1310 = vld [vmem:[#allocation8 + $0x2e8] sm:$0xff]
    %v1311 = vld [vmem:[#allocation8 + $0x2f0] sm:$0xff]
    %v1312 = vld [vmem:[#allocation8 + $0x2f8] sm:$0xff]
    %v1313 = vld [vmem:[#allocation8 + $0x300] sm:$0xff]
    %v1314 = vld [vmem:[#allocation8 + $0x308] sm:$0xff]
    %v1315 = vld [vmem:[#allocation8 + $0x310] sm:$0xff]
    %v1316 = vld [vmem:[#allocation8 + $0x318] sm:$0xff]
    %v1317 = vld [vmem:[#allocation8 + $0x320] sm:$0xff]
    %v1318 = vld [vmem:[#allocation8 + $0x328] sm:$0xff]
    %v1319 = vld [vmem:[#allocation8 + $0x330] sm:$0xff]
    %v1320 = vld [vmem:[#allocation8 + $0x338] sm:$0xff]
    %v1321 = vld [vmem:[#allocation8 + $0x340] sm:$0xff]
    %v1322 = vld [vmem:[#allocation8 + $0x348] sm:$0xff]
    %v1323 = vld [vmem:[#allocation8 + $0x350] sm:$0xff]
    %v1324 = vld [vmem:[#allocation8 + $0x358] sm:$0xff]
    %v1325 = vld [vmem:[#allocation8 + $0x360] sm:$0xff]
    %v1326 = vld [vmem:[#allocation8 + $0x368] sm:$0xff]
    %v1327 = vld [vmem:[#allocation8 + $0x370] sm:$0xff]
    %v1328 = vld [vmem:[#allocation8 + $0x378] sm:$0xff]
    %v1329 = vld [vmem:[#allocation8 + $0x380] sm:$0xff]
    %v1330 = vld [vmem:[#allocation8 + $0x388] sm:$0xff]
    %v1331 = vld [vmem:[#allocation8 + $0x390] sm:$0xff]
    %v1332 = vld [vmem:[#allocation8 + $0x398] sm:$0xff]
    %v1333 = vld [vmem:[#allocation8 + $0x3a0] sm:$0xff]
    %v1334 = vld [vmem:[#allocation8 + $0x3a8] sm:$0xff]
    %v1335 = vld [vmem:[#allocation8 + $0x3b0] sm:$0xff]
    %v1336 = vld [vmem:[#allocation8 + $0x3b8] sm:$0xff]
    %v1337 = vld [vmem:[#allocation8 + $0x3c0] sm:$0xff]
    %v1338 = vld [vmem:[#allocation8 + $0x3c8] sm:$0xff]
    %v1339 = vld [vmem:[#allocation8 + $0x3d0] sm:$0xff]
    %v1340 = vld [vmem:[#allocation8 + $0x3d8] sm:$0xff]
    %v1341 = vld [vmem:[#allocation8 + $0x3e0] sm:$0xff]
    %v1342 = vld [vmem:[#allocation8 + $0x3e8] sm:$0xff]
    %v1343 = vld [vmem:[#allocation8 + $0x3f0] sm:$0xff]
    %v1344 = vld [vmem:[#allocation8 + $0x3f8] sm:$0xff]
    %v1345 = vld [vmem:[#allocation8 + $0x400] sm:$0xff]
    %v1346 = vld [vmem:[#allocation8 + $0x408] sm:$0xff]
    %v1347 = vld [vmem:[#allocation8 + $0x410] sm:$0xff]
    %v1348 = vld [vmem:[#allocation8 + $0x418] sm:$0xff]
    %v1349 = vld [vmem:[#allocation8 + $0x420] sm:$0xff]
    %v1350 = vld [vmem:[#allocation8 + $0x428] sm:$0xff]
    %v1351 = vld [vmem:[#allocation8 + $0x430] sm:$0xff]
    %v1352 = vld [vmem:[#allocation8 + $0x438] sm:$0xff]
    %v1353 = vld [vmem:[#allocation8 + $0x440] sm:$0xff]
    %v1354 = vld [vmem:[#allocation8 + $0x448] sm:$0xff]
    %v1355 = vld [vmem:[#allocation8 + $0x450] sm:$0xff]
    %v1356 = vld [vmem:[#allocation8 + $0x458] sm:$0xff]
    %v1357 = vld [vmem:[#allocation8 + $0x460] sm:$0xff]
    %v1358 = vld [vmem:[#allocation8 + $0x468] sm:$0xff]
    %v1359 = vld [vmem:[#allocation8 + $0x470] sm:$0xff]
    %v1360 = vld [vmem:[#allocation8 + $0x478] sm:$0xff]
    %v1361 = vld [vmem:[#allocation8 + $0x480] sm:$0xff]
    %v1362 = vld [vmem:[#allocation8 + $0x488] sm:$0xff]
    %v1363 = vld [vmem:[#allocation8 + $0x490] sm:$0xff]
    %v1364 = vld [vmem:[#allocation8 + $0x498] sm:$0xff]
    %v1365 = vld [vmem:[#allocation8 + $0x4a0] sm:$0xff]
    %v1366 = vld [vmem:[#allocation8 + $0x4a8] sm:$0xff]
    %v1367 = vld [vmem:[#allocation8 + $0x4b0] sm:$0xff]
    %v1368 = vld [vmem:[#allocation8 + $0x4b8] sm:$0xff]
    %v1369 = vld [vmem:[#allocation8 + $0x4c0] sm:$0xff]
    %v1370 = vld [vmem:[#allocation8 + $0x4c8] sm:$0xff]
    %v1371 = vld [vmem:[#allocation8 + $0x4d0] sm:$0xff]
    %v1372 = vld [vmem:[#allocation8 + $0x4d8] sm:$0xff]
    %v1373 = vld [vmem:[#allocation8 + $0x4e0] sm:$0xff]
    %v1374 = vld [vmem:[#allocation8 + $0x4e8] sm:$0xff]
    %v1375 = vld [vmem:[#allocation8 + $0x4f0] sm:$0xff]
    %v1376 = vld [vmem:[#allocation8 + $0x4f8] sm:$0xff]
    %v1377 = vld [vmem:[#allocation8 + $0x500] sm:$0xff]
    %v1378 = vld [vmem:[#allocation8 + $0x508] sm:$0xff]
    %v1379 = vld [vmem:[#allocation8 + $0x510] sm:$0xff]
    %v1380 = vld [vmem:[#allocation8 + $0x518] sm:$0xff]
    %v1381 = vld [vmem:[#allocation8 + $0x520] sm:$0xff]
    %v1382 = vld [vmem:[#allocation8 + $0x528] sm:$0xff]
    %v1383 = vld [vmem:[#allocation8 + $0x530] sm:$0xff]
    %v1384 = vld [vmem:[#allocation8 + $0x538] sm:$0xff]
    %v1385 = vld [vmem:[#allocation8 + $0x540] sm:$0xff]
    %v1386 = vld [vmem:[#allocation8 + $0x548] sm:$0xff]
    %v1387 = vld [vmem:[#allocation8 + $0x550] sm:$0xff]
    %v1388 = vld [vmem:[#allocation8 + $0x558] sm:$0xff]
    %v1389 = vld [vmem:[#allocation8 + $0x560] sm:$0xff]
    %v1390 = vld [vmem:[#allocation8 + $0x568] sm:$0xff]
    %v1391 = vld [vmem:[#allocation8 + $0x570] sm:$0xff]
    %v1392 = vld [vmem:[#allocation8 + $0x578] sm:$0xff]
    %v1393 = vld [vmem:[#allocation8 + $0x580] sm:$0xff]
    %v1394 = vld [vmem:[#allocation8 + $0x588] sm:$0xff]
    %v1395 = vld [vmem:[#allocation8 + $0x590] sm:$0xff]
    %v1396 = vld [vmem:[#allocation8 + $0x598] sm:$0xff]
    %v1397 = vld [vmem:[#allocation8 + $0x5a0] sm:$0xff]
    %v1398 = vld [vmem:[#allocation8 + $0x5a8] sm:$0xff]
    %v1399 = vld [vmem:[#allocation8 + $0x5b0] sm:$0xff]
    %v1400 = vld [vmem:[#allocation8 + $0x5b8] sm:$0xff]
    %v1401 = vld [vmem:[#allocation8 + $0x5c0] sm:$0xff]
    %v1402 = vld [vmem:[#allocation8 + $0x5c8] sm:$0xff]
    %v1403 = vld [vmem:[#allocation8 + $0x5d0] sm:$0xff]
    %v1404 = vld [vmem:[#allocation8 + $0x5d8] sm:$0xff]
    %v1405 = vld [vmem:[#allocation8 + $0x5e0] sm:$0xff]
    %v1406 = vld [vmem:[#allocation8 + $0x5e8] sm:$0xff]
    %v1407 = vld [vmem:[#allocation8 + $0x5f0] sm:$0xff]
    %v1408 = vld [vmem:[#allocation8 + $0x5f8] sm:$0xff]
    %v1409 = vld [vmem:[#allocation8 + $0x600] sm:$0xff]
    %v1410 = vld [vmem:[#allocation8 + $0x608] sm:$0xff]
    %v1411 = vld [vmem:[#allocation8 + $0x610] sm:$0xff]
    %v1412 = vld [vmem:[#allocation8 + $0x618] sm:$0xff]
    %v1413 = vld [vmem:[#allocation8 + $0x620] sm:$0xff]
    %v1414 = vld [vmem:[#allocation8 + $0x628] sm:$0xff]
    %v1415 = vld [vmem:[#allocation8 + $0x630] sm:$0xff]
    %v1416 = vld [vmem:[#allocation8 + $0x638] sm:$0xff]
    %v1417 = vld [vmem:[#allocation8 + $0x640] sm:$0xff]
    %v1418 = vld [vmem:[#allocation8 + $0x648] sm:$0xff]
    %v1419 = vld [vmem:[#allocation8 + $0x650] sm:$0xff]
    %v1420 = vld [vmem:[#allocation8 + $0x658] sm:$0xff]
    %v1421 = vld [vmem:[#allocation8 + $0x660] sm:$0xff]
    %v1422 = vld [vmem:[#allocation8 + $0x668] sm:$0xff]
    %v1423 = vld [vmem:[#allocation8 + $0x670] sm:$0xff]
    %v1424 = vld [vmem:[#allocation8 + $0x678] sm:$0xff]
    %v1425 = vld [vmem:[#allocation8 + $0x680] sm:$0xff]
    %v1426 = vld [vmem:[#allocation8 + $0x688] sm:$0xff]
    %v1427 = vld [vmem:[#allocation8 + $0x690] sm:$0xff]
    %v1428 = vld [vmem:[#allocation8 + $0x698] sm:$0xff]
    %v1429 = vld [vmem:[#allocation8 + $0x6a0] sm:$0xff]
    %v1430 = vld [vmem:[#allocation8 + $0x6a8] sm:$0xff]
    %v1431 = vld [vmem:[#allocation8 + $0x6b0] sm:$0xff]
    %v1432 = vld [vmem:[#allocation8 + $0x6b8] sm:$0xff]
    %v1433 = vld [vmem:[#allocation8 + $0x6c0] sm:$0xff]
    %v1434 = vld [vmem:[#allocation8 + $0x6c8] sm:$0xff]
    %v1435 = vld [vmem:[#allocation8 + $0x6d0] sm:$0xff]
    %v1436 = vld [vmem:[#allocation8 + $0x6d8] sm:$0xff]
    %v1437 = vld [vmem:[#allocation8 + $0x6e0] sm:$0xff]
    %v1438 = vld [vmem:[#allocation8 + $0x6e8] sm:$0xff]
    %v1439 = vld [vmem:[#allocation8 + $0x6f0] sm:$0xff]
    %v1440 = vld [vmem:[#allocation8 + $0x6f8] sm:$0xff]
    %v1441 = vld [vmem:[#allocation8 + $0x700] sm:$0xff]
    %v1442 = vld [vmem:[#allocation8 + $0x708] sm:$0xff]
    %v1443 = vld [vmem:[#allocation8 + $0x710] sm:$0xff]
    %v1444 = vld [vmem:[#allocation8 + $0x718] sm:$0xff]
    %v1445 = vld [vmem:[#allocation8 + $0x720] sm:$0xff]
    %v1446 = vld [vmem:[#allocation8 + $0x728] sm:$0xff]
    %v1447 = vld [vmem:[#allocation8 + $0x730] sm:$0xff]
    %v1448 = vld [vmem:[#allocation8 + $0x738] sm:$0xff]
    %v1449 = vld [vmem:[#allocation8 + $0x740] sm:$0xff]
    %v1450 = vld [vmem:[#allocation8 + $0x748] sm:$0xff]
    %v1451 = vld [vmem:[#allocation8 + $0x750] sm:$0xff]
    %v1452 = vld [vmem:[#allocation8 + $0x758] sm:$0xff]
    %v1453 = vld [vmem:[#allocation8 + $0x760] sm:$0xff]
    %v1454 = vld [vmem:[#allocation8 + $0x768] sm:$0xff]
    %v1455 = vld [vmem:[#allocation8 + $0x770] sm:$0xff]
    %v1456 = vld [vmem:[#allocation8 + $0x778] sm:$0xff]
    %v1457 = vld [vmem:[#allocation8 + $0x780] sm:$0xff]
    %v1458 = vld [vmem:[#allocation8 + $0x788] sm:$0xff]
    %v1459 = vld [vmem:[#allocation8 + $0x790] sm:$0xff]
    %v1460 = vld [vmem:[#allocation8 + $0x798] sm:$0xff]
    %v1461 = vld [vmem:[#allocation8 + $0x7a0] sm:$0xff]
    %v1462 = vld [vmem:[#allocation8 + $0x7a8] sm:$0xff]
    %v1463 = vld [vmem:[#allocation8 + $0x7b0] sm:$0xff]
    %v1464 = vld [vmem:[#allocation8 + $0x7b8] sm:$0xff]
    %v1465 = vld [vmem:[#allocation8 + $0x7c0] sm:$0xff]
    %v1466 = vld [vmem:[#allocation8 + $0x7c8] sm:$0xff]
    %v1467 = vld [vmem:[#allocation8 + $0x7d0] sm:$0xff]
    %v1468 = vld [vmem:[#allocation8 + $0x7d8] sm:$0xff]
    %v1469 = vld [vmem:[#allocation8 + $0x7e0] sm:$0xff]
    %v1470 = vld [vmem:[#allocation8 + $0x7e8] sm:$0xff]
    %v1471 = vld [vmem:[#allocation8 + $0x7f0] sm:$0xff]
    %v1472 = vld [vmem:[#allocation8 + $0x7f8] sm:$0xff]
    %1473 = vmatprep.subr.mxu0 %v1218
    %1474 = vmatpush1.msra.mxu0 %v1217
    %1475 = vmatprep.subr.mxu0 %v1222
    %1476 = vmatpush1.msra.mxu0 %v1221
    %1477 = vmatprep.subr.mxu0 %v1226
    %1478 = vmatpush1.msra.mxu0 %v1225
    %1479 = vmatprep.subr.mxu0 %v1230
    %1480 = vmatpush1.msra.mxu0 %v1229
    %1481 = vmatprep.subr.mxu0 %v1234
    %1482 = vmatpush1.msra.mxu0 %v1233
    %1483 = vmatprep.subr.mxu0 %v1238
    %1484 = vmatpush1.msra.mxu0 %v1237
    %1485 = vmatprep.subr.mxu0 %v1242
    %1486 = vmatpush1.msra.mxu0 %v1241
    %1487 = vmatprep.subr.mxu0 %v1246
    %1488 = vmatpush1.msra.mxu0 %v1245
    %1489 = vmatprep.subr.mxu0 %v1250
    %1490 = vmatpush1.msra.mxu0 %v1249
    %1491 = vmatprep.subr.mxu0 %v1254
    %1492 = vmatpush1.msra.mxu0 %v1253
    %1493 = vmatprep.subr.mxu0 %v1258
    %1494 = vmatpush1.msra.mxu0 %v1257
    %1495 = vmatprep.subr.mxu0 %v1262
    %1496 = vmatpush1.msra.mxu0 %v1261
    %1497 = vmatprep.subr.mxu0 %v1266
    %1498 = vmatpush1.msra.mxu0 %v1265
    %1499 = vmatprep.subr.mxu0 %v1270
    %1500 = vmatpush1.msra.mxu0 %v1269
    %1501 = vmatprep.subr.mxu0 %v1274
    %1502 = vmatpush1.msra.mxu0 %v1273
    %1503 = vmatprep.subr.mxu0 %v1278
    %1504 = vmatpush1.msra.mxu0 %v1277
    %1505 = vmatprep.subr.mxu0 %v1282
    %1506 = vmatpush1.msra.mxu0 %v1281
    %1507 = vmatprep.subr.mxu0 %v1286
    %1508 = vmatpush1.msra.mxu0 %v1285
    %1509 = vmatprep.subr.mxu0 %v1290
    %1510 = vmatpush1.msra.mxu0 %v1289
    %1511 = vmatprep.subr.mxu0 %v1294
    %1512 = vmatpush1.msra.mxu0 %v1293
    %1513 = vmatprep.subr.mxu0 %v1298
    %1514 = vmatpush1.msra.mxu0 %v1297
    %1515 = vmatprep.subr.mxu0 %v1302
    %1516 = vmatpush1.msra.mxu0 %v1301
    %1517 = vmatprep.subr.mxu0 %v1306
    %1518 = vmatpush1.msra.mxu0 %v1305
    %1519 = vmatprep.subr.mxu0 %v1310
    %1520 = vmatpush1.msra.mxu0 %v1309
    %1521 = vmatprep.subr.mxu0 %v1314
    %1522 = vmatpush1.msra.mxu0 %v1313
    %1523 = vmatprep.subr.mxu0 %v1318
    %1524 = vmatpush1.msra.mxu0 %v1317
    %1525 = vmatprep.subr.mxu0 %v1322
    %1526 = vmatpush1.msra.mxu0 %v1321
    %1527 = vmatprep.subr.mxu0 %v1326
    %1528 = vmatpush1.msra.mxu0 %v1325
    %1529 = vmatprep.subr.mxu0 %v1330
    %1530 = vmatpush1.msra.mxu0 %v1329
    %1531 = vmatprep.subr.mxu0 %v1334
    %1532 = vmatpush1.msra.mxu0 %v1333
    %1533 = vmatprep.subr.mxu0 %v1338
    %1534 = vmatpush1.msra.mxu0 %v1337
    %1535 = vmatprep.subr.mxu0 %v1342
    %1536 = vmatpush1.msra.mxu0 %v1341
    %1537 = vmatprep.mubr.f32.mxu0 %v1214
    %1538 = vmatmul.mubr.f32.gmra.mrb[0].mxu0 %v1213
    %v1539 = vpop.f32.mrb[0].mxu0
    %v1540 = vadd.f32 0.0, %v1539
    %v1541 = vpop.f32.mrb[0].mxu0
    %v1542 = vadd.f32 0.0, %v1541
    %1543 = vdwg.mxu0
    %1544 = vmatprep.subr.mxu0 %v1346
    %1545 = vmatpush1.msra.mxu0 %v1345
    %1546 = vmatprep.subr.mxu0 %v1350
    %1547 = vmatpush1.msra.mxu0 %v1349
    %1548 = vmatprep.subr.mxu0 %v1354
    %1549 = vmatpush1.msra.mxu0 %v1353
    %1550 = vmatprep.subr.mxu0 %v1358
    %1551 = vmatpush1.msra.mxu0 %v1357
    %1552 = vmatprep.subr.mxu0 %v1362
    %1553 = vmatpush1.msra.mxu0 %v1361
    %1554 = vmatprep.subr.mxu0 %v1366
    %1555 = vmatpush1.msra.mxu0 %v1365
    %1556 = vmatprep.subr.mxu0 %v1370
    %1557 = vmatpush1.msra.mxu0 %v1369
    %1558 = vmatprep.subr.mxu0 %v1374
    %1559 = vmatpush1.msra.mxu0 %v1373
    %1560 = vmatprep.subr.mxu0 %v1378
    %1561 = vmatpush1.msra.mxu0 %v1377
    %1562 = vmatprep.subr.mxu0 %v1382
    %1563 = vmatpush1.msra.mxu0 %v1381
    %1564 = vmatprep.subr.mxu0 %v1386
    %1565 = vmatpush1.msra.mxu0 %v1385
    %1566 = vmatprep.subr.mxu0 %v1390
    %1567 = vmatpush1.msra.mxu0 %v1389
    %1568 = vmatprep.subr.mxu0 %v1394
    %1569 = vmatpush1.msra.mxu0 %v1393
    %1570 = vmatprep.subr.mxu0 %v1398
    %1571 = vmatpush1.msra.mxu0 %v1397
    %1572 = vmatprep.subr.mxu0 %v1402
    %1573 = vmatpush1.msra.mxu0 %v1401
    %1574 = vmatprep.subr.mxu0 %v1406
    %1575 = vmatpush1.msra.mxu0 %v1405
    %1576 = vmatprep.subr.mxu0 %v1410
    %1577 = vmatpush1.msra.mxu0 %v1409
    %1578 = vmatprep.subr.mxu0 %v1414
    %1579 = vmatpush1.msra.mxu0 %v1413
    %1580 = vmatprep.subr.mxu0 %v1418
    %1581 = vmatpush1.msra.mxu0 %v1417
    %1582 = vmatprep.subr.mxu0 %v1422
    %1583 = vmatpush1.msra.mxu0 %v1421
    %1584 = vmatprep.subr.mxu0 %v1426
    %1585 = vmatpush1.msra.mxu0 %v1425
    %1586 = vmatprep.subr.mxu0 %v1430
    %1587 = vmatpush1.msra.mxu0 %v1429
    %1588 = vmatprep.subr.mxu0 %v1434
    %1589 = vmatpush1.msra.mxu0 %v1433
    %1590 = vmatprep.subr.mxu0 %v1438
    %1591 = vmatpush1.msra.mxu0 %v1437
    %1592 = vmatprep.subr.mxu0 %v1442
    %1593 = vmatpush1.msra.mxu0 %v1441
    %1594 = vmatprep.subr.mxu0 %v1446
    %1595 = vmatpush1.msra.mxu0 %v1445
    %1596 = vmatprep.subr.mxu0 %v1450
    %1597 = vmatpush1.msra.mxu0 %v1449
    %1598 = vmatprep.subr.mxu0 %v1454
    %1599 = vmatpush1.msra.mxu0 %v1453
    %1600 = vmatprep.subr.mxu0 %v1458
    %1601 = vmatpush1.msra.mxu0 %v1457
    %1602 = vmatprep.subr.mxu0 %v1462
    %1603 = vmatpush1.msra.mxu0 %v1461
    %1604 = vmatprep.subr.mxu0 %v1466
    %1605 = vmatpush1.msra.mxu0 %v1465
    %1606 = vmatprep.subr.mxu0 %v1470
    %1607 = vmatpush1.msra.mxu0 %v1469
    %1608 = vmatprep.mubr.f32.mxu0 %v1216
    %1609 = vmatmul.mubr.f32.gmra.mrb[0].mxu0 %v1215
    %v1610 = vpop.f32.mrb[0].mxu0
    %v1611 = vadd.f32 %v1540, %v1610
    %v1612 = vpop.f32.mrb[0].mxu0
    %v1613 = vadd.f32 %v1542, %v1612
    %1614 = vdwg.mxu0
    %1615 = vmatprep.subr.mxu0 %v1220
    %1616 = vmatpush1.msra.mxu0 %v1219
    %1617 = vmatprep.subr.mxu0 %v1224
    %1618 = vmatpush1.msra.mxu0 %v1223
    %1619 = vmatprep.subr.mxu0 %v1228
    %1620 = vmatpush1.msra.mxu0 %v1227
    %1621 = vmatprep.subr.mxu0 %v1232
    %1622 = vmatpush1.msra.mxu0 %v1231
    %1623 = vmatprep.subr.mxu0 %v1236
    %1624 = vmatpush1.msra.mxu0 %v1235
    %1625 = vmatprep.subr.mxu0 %v1240
    %1626 = vmatpush1.msra.mxu0 %v1239
    %1627 = vmatprep.subr.mxu0 %v1244
    %1628 = vmatpush1.msra.mxu0 %v1243
    %1629 = vmatprep.subr.mxu0 %v1248
    %1630 = vmatpush1.msra.mxu0 %v1247
    %1631 = vmatprep.subr.mxu0 %v1252
    %1632 = vmatpush1.msra.mxu0 %v1251
    %1633 = vmatprep.subr.mxu0 %v1256
    %1634 = vmatpush1.msra.mxu0 %v1255
    %1635 = vmatprep.subr.mxu0 %v1260
    %1636 = vmatpush1.msra.mxu0 %v1259
    %1637 = vmatprep.subr.mxu0 %v1264
    %1638 = vmatpush1.msra.mxu0 %v1263
    %1639 = vmatprep.subr.mxu0 %v1268
    %1640 = vmatpush1.msra.mxu0 %v1267
    %1641 = vmatprep.subr.mxu0 %v1272
    %1642 = vmatpush1.msra.mxu0 %v1271
    %1643 = vmatprep.subr.mxu0 %v1276
    %1644 = vmatpush1.msra.mxu0 %v1275
    %1645 = vmatprep.subr.mxu0 %v1280
    %1646 = vmatpush1.msra.mxu0 %v1279
    %1647 = vmatprep.subr.mxu0 %v1284
    %1648 = vmatpush1.msra.mxu0 %v1283
    %1649 = vmatprep.subr.mxu0 %v1288
    %1650 = vmatpush1.msra.mxu0 %v1287
    %1651 = vmatprep.subr.mxu0 %v1292
    %1652 = vmatpush1.msra.mxu0 %v1291
    %1653 = vmatprep.subr.mxu0 %v1296
    %1654 = vmatpush1.msra.mxu0 %v1295
    %1655 = vmatprep.subr.mxu0 %v1300
    %1656 = vmatpush1.msra.mxu0 %v1299
    %1657 = vmatprep.subr.mxu0 %v1304
    %1658 = vmatpush1.msra.mxu0 %v1303
    %1659 = vmatprep.subr.mxu0 %v1308
    %1660 = vmatpush1.msra.mxu0 %v1307
    %1661 = vmatprep.subr.mxu0 %v1312
    %1662 = vmatpush1.msra.mxu0 %v1311
    %1663 = vmatprep.subr.mxu0 %v1316
    %1664 = vmatpush1.msra.mxu0 %v1315
    %1665 = vmatprep.subr.mxu0 %v1320
    %1666 = vmatpush1.msra.mxu0 %v1319
    %1667 = vmatprep.subr.mxu0 %v1324
    %1668 = vmatpush1.msra.mxu0 %v1323
    %1669 = vmatprep.subr.mxu0 %v1328
    %1670 = vmatpush1.msra.mxu0 %v1327
    %1671 = vmatprep.subr.mxu0 %v1332
    %1672 = vmatpush1.msra.mxu0 %v1331
    %1673 = vmatprep.subr.mxu0 %v1336
    %1674 = vmatpush1.msra.mxu0 %v1335
    %1675 = vmatprep.subr.mxu0 %v1340
    %1676 = vmatpush1.msra.mxu0 %v1339
    %1677 = vmatprep.subr.mxu0 %v1344
    %1678 = vmatpush1.msra.mxu0 %v1343
    %1679 = vmatprep.mubr.f32.mxu0 %v1214
    %1680 = vmatmul.mubr.f32.gmra.mrb[0].mxu0 %v1213
    %v1681 = vpop.f32.mrb[0].mxu0
    %v1682 = vadd.f32 0.0, %v1681
    %v1683 = vpop.f32.mrb[0].mxu0
    %v1684 = vadd.f32 0.0, %v1683
    %1685 = vdwg.mxu0
    %1686 = vmatprep.subr.mxu0 %v1348
    %1687 = vmatpush1.msra.mxu0 %v1347
    %1688 = vmatprep.subr.mxu0 %v1352
    %1689 = vmatpush1.msra.mxu0 %v1351
    %1690 = vmatprep.subr.mxu0 %v1356
    %1691 = vmatpush1.msra.mxu0 %v1355
    %1692 = vmatprep.subr.mxu0 %v1360
    %1693 = vmatpush1.msra.mxu0 %v1359
    %1694 = vmatprep.subr.mxu0 %v1364
    %1695 = vmatpush1.msra.mxu0 %v1363
    %1696 = vmatprep.subr.mxu0 %v1368
    %1697 = vmatpush1.msra.mxu0 %v1367
    %1698 = vmatprep.subr.mxu0 %v1372
    %1699 = vmatpush1.msra.mxu0 %v1371
    %1700 = vmatprep.subr.mxu0 %v1376
    %1701 = vmatpush1.msra.mxu0 %v1375
    %1702 = vmatprep.subr.mxu0 %v1380
    %1703 = vmatpush1.msra.mxu0 %v1379
    %1704 = vmatprep.subr.mxu0 %v1384
    %1705 = vmatpush1.msra.mxu0 %v1383
    %1706 = vmatprep.subr.mxu0 %v1388
    %1707 = vmatpush1.msra.mxu0 %v1387
    %1708 = vmatprep.subr.mxu0 %v1392
    %1709 = vmatpush1.msra.mxu0 %v1391
    %1710 = vmatprep.subr.mxu0 %v1396
    %1711 = vmatpush1.msra.mxu0 %v1395
    %1712 = vmatprep.subr.mxu0 %v1400
    %1713 = vmatpush1.msra.mxu0 %v1399
    %1714 = vmatprep.subr.mxu0 %v1404
    %1715 = vmatpush1.msra.mxu0 %v1403
    %1716 = vmatprep.subr.mxu0 %v1408
    %1717 = vmatpush1.msra.mxu0 %v1407
    %1718 = vmatprep.subr.mxu0 %v1412
    %1719 = vmatpush1.msra.mxu0 %v1411
    %1720 = vmatprep.subr.mxu0 %v1416
    %1721 = vmatpush1.msra.mxu0 %v1415
    %1722 = vmatprep.subr.mxu0 %v1420
    %1723 = vmatpush1.msra.mxu0 %v1419
    %1724 = vmatprep.subr.mxu0 %v1424
    %1725 = vmatpush1.msra.mxu0 %v1423
    %1726 = vmatprep.subr.mxu0 %v1428
    %1727 = vmatpush1.msra.mxu0 %v1427
    %1728 = vmatprep.subr.mxu0 %v1432
    %1729 = vmatpush1.msra.mxu0 %v1431
    %1730 = vmatprep.subr.mxu0 %v1436
    %1731 = vmatpush1.msra.mxu0 %v1435
    %1732 = vmatprep.subr.mxu0 %v1440
    %1733 = vmatpush1.msra.mxu0 %v1439
    %1734 = vmatprep.subr.mxu0 %v1444
    %1735 = vmatpush1.msra.mxu0 %v1443
    %1736 = vmatprep.subr.mxu0 %v1448
    %1737 = vmatpush1.msra.mxu0 %v1447
    %1738 = vmatprep.subr.mxu0 %v1452
    %1739 = vmatpush1.msra.mxu0 %v1451
    %1740 = vmatprep.subr.mxu0 %v1456
    %1741 = vmatpush1.msra.mxu0 %v1455
    %1742 = vmatprep.subr.mxu0 %v1460
    %1743 = vmatpush1.msra.mxu0 %v1459
    %1744 = vmatprep.subr.mxu0 %v1464
    %1745 = vmatpush1.msra.mxu0 %v1463
    %1746 = vmatprep.subr.mxu0 %v1468
    %1747 = vmatpush1.msra.mxu0 %v1467
    %1748 = vmatprep.subr.mxu0 %v1472
    %1749 = vmatpush1.msra.mxu0 %v1471
    %1750 = vmatprep.mubr.f32.mxu0 %v1216
    %1751 = vmatmul.mubr.f32.gmra.mrb[0].mxu0 %v1215
    %v1752 = vpop.f32.mrb[0].mxu0
    %v1753 = vadd.f32 %v1682, %v1752
    %v1754 = vpop.f32.mrb[0].mxu0
    %v1755 = vadd.f32 %v1684, %v1754
    %1756 = vdwg.mxu0
    %v1757 = vmax.f32 %v1611, %v1613
    %v1758 = vmax.f32 %v1753, %v1755
    %v1759 = vmax.f32 %v1757, %v1758
    %v1760 = vld [vmem:[#allocation10] sm:$0x1]
    %v1762 = vlaneseq
    %v1763 = vshrl.u32 %v1762, 7
    %v1764 = vsub.s32 0, %v1763
    %v1765 = vrot.slane %v1760, %v1764
    %v1767 = vadd.f32 %v1759, %v1765
    %v1768 = vmax.f32 %v1767, 0.0
    %1769 = vst [vmem:[#allocation11] sm:$0x3] %v1768
    // Predicated region
    $region42: #{tpu_custom_call.1} parent=1 // pred_check
      _
    $region43: #{tpu_custom_call.1} parent=1 // pred_check_branch
      %1771 = sbr.rel (0) target = $region45
    $region44: #{tpu_custom_call.1} parent=1 // pred_region
      %s1773 = ssub.s32 32, 32
      %1774 = vsyncadd [#allocation4], %s1773
      %s1776 = sshll.u32 [#allocation11], 4
      %s1777 = int_to_ptr.vmem [resolvable:$true] %s1776
      %1779 = dma.vmem_to_hbm [thread:$0]  %s1777, 32, %s5, [#allocation4]
    $region45: #{tpu_custom_call.1} parent=1 // pred_fallthru
      _
    // Predicated region
    $region46: #{tpu_custom_call.1} parent=1 // pred_check
      _
    $region47: #{tpu_custom_call.1} parent=1 // pred_check_branch
      %1781 = sbr.rel (0) target = $region49
    $region48: #{tpu_custom_call.1} parent=1 // pred_region
      %1782 = dma.done [#allocation4], 32
    $region49: #{tpu_custom_call.1} parent=1 // pred_fallthru
      _
    %1783 = vsyncpa [#allocation3], 1
    %1784 = vsyncpa [#allocation6], 1
    %1785 = vsyncpa [#allocation9], 1
    %1786 = vsyncpa [#allocation4], 1

</llo_original>
